<compile_context>
chip_gen: v5e
topology: v5e:2x2
jax: 0.10.0
libtpu: 0.0.40
codegen_flags: <defaults>
</compile_context>

<pallas_src>
import functools
from collections import OrderedDict

import jax
import jax.numpy as jnp
import numpy as np
from jax.experimental import pallas as pl
from jax.experimental.pallas import tpu as pltpu

_NEG = -1e30


def _rcnn_pp_kernel(hw_ref, rois_ref, scores_ref, deltas_ref, out_ref, *,
                    c_pad, top_k, k_pad, nms_thr, score_thr, delta_mean,
                    delta_std):
    """Per-image RCNN post-process.

    hw_ref:     SMEM (B, 2) int32      -- (h, w) per image (scalar prefetch)
    rois_ref:   VMEM (4, N)            -- rows x1, y1, x2, y2      (N padded)
    scores_ref: VMEM (C_pad, N)        -- foreground classes only, pad = -1e30
    deltas_ref: VMEM (4*C_pad, N)      -- coordinate-major: row j*C_pad + cls
    out_ref:    VMEM (8, K_pad)        -- rows 0..5 = [x1,y1,x2,y2,score,class]
    """
    b = pl.program_id(0)
    n = rois_ref.shape[1]
    f32 = jnp.float32
    i32 = jnp.int32

    img_h = hw_ref[b, 0].astype(f32)
    img_w = hw_ref[b, 1].astype(f32)

    # ---- best foreground class per box (vectorized over class sublanes) ----
    fg = scores_ref[...]                                           # (C_pad, N)
    best_score = jnp.max(fg, axis=0, keepdims=True)                # (1, N)
    cls_iota = jax.lax.broadcasted_iota(i32, (c_pad, n), 0)
    best_cls = jnp.min(jnp.where(fg == best_score, cls_iota, c_pad),
                       axis=0, keepdims=True)                      # (1,N) 0-based
    onehot = (cls_iota == best_cls).astype(f32)                    # (C_pad, N)

    # ---- gather chosen-class deltas; each coord group is sublane-aligned ----
    d = []
    for j in range(4):
        blk = deltas_ref[j * c_pad:(j + 1) * c_pad, :]             # (C_pad, N)
        dj = jnp.sum(onehot * blk, axis=0, keepdims=True)          # (1, N)
        d.append(dj * f32(delta_std[j]) + f32(delta_mean[j]))
    dxy = jnp.concatenate(d[0:2], axis=0)                          # (2, N)
    dwh = jnp.concatenate(d[2:4], axis=0)                          # (2, N)

    # ---- decode boxes on stacked (2, N) views -------------------------------
    lo0 = rois_ref[0:2, :]                                         # x1; y1
    hi0 = rois_ref[2:4, :]                                         # x2; y2
    wh = hi0 - lo0
    ctr = lo0 + 0.5 * wh
    pc = dxy * wh + ctr
    pwh = jnp.exp(dwh) * wh
    lo = pc - 0.5 * pwh
    hi = pc + 0.5 * pwh
    row2 = jax.lax.broadcasted_iota(i32, (2, 1), 0)
    bound = jnp.where(row2 == 0, img_w - 1.0, img_h - 1.0)         # (2, 1)
    lo = jnp.clip(lo, 0.0, bound)
    hi = jnp.clip(hi, 0.0, bound)
    ext = jnp.maximum(hi - lo, 0.0)
    area = ext[0:1, :] * ext[1:2, :]                               # (1, N)
    cls_f = best_cls.astype(f32)                                   # (1, N)

    # ---- all per-box fields on the sublanes of ONE (8, N) register block ----
    packed = jnp.concatenate(
        [lo, hi, area, cls_f, jnp.zeros((2, n), f32)], axis=0)     # (8, N)

    # score filter applied up front (equivalent to filter-before-NMS);
    # padded lanes arrive at _NEG and stay there.
    work0 = jnp.where(best_score >= f32(score_thr), best_score, f32(_NEG))
    lane_k = jax.lax.broadcasted_iota(i32, (1, k_pad), 1)
    sub8 = jax.lax.broadcasted_iota(i32, (8, 1), 0)
    out0 = jnp.full((8, k_pad), -1.0, f32)                         # lane-dense
    thr = f32(nms_thr)

    def body(k, carry):
        work, out_acc = carry
        # XLU chain depth 2: max, then {masked field sum, tie count} which
        # depend only on bs and co-issue on the 2 XLUs (v6e/v7x).
        bs = jnp.max(work, axis=1, keepdims=True)                  # (1, 1)
        sel = work == bs                                           # (1, N)
        picked = jnp.sum(jnp.where(sel, packed, 0.0),
                         axis=1, keepdims=True)                    # (8, 1)
        cnt = jnp.sum(sel.astype(f32), axis=1, keepdims=True)      # (1, 1)
        # cnt == 1 in the non-tie case -> division is exact; on exact score
        # ties this averages the tied boxes (reference picks the first index).
        picked = picked / cnt

        p_lo = picked[0:2, :]
        p_hi = picked[2:4, :]
        area_s = picked[4:5, :]
        cls_s = picked[5:6, :]
        b_lo = packed[0:2, :]
        b_hi = packed[2:4, :]
        b_area = packed[4:5, :]
        b_cls = packed[5:6, :]

        ilo = jnp.maximum(b_lo, p_lo)                              # (2, N)
        ihi = jnp.minimum(b_hi, p_hi)
        iwh = jnp.maximum(ihi - ilo, 0.0)
        inter = iwh[0:1, :] * iwh[1:2, :]                          # (1, N)
        union = b_area + area_s - inter + f32(1e-6)
        # divide-free IoU > thr test: inter > thr * union
        suppress = sel | ((b_cls == cls_s) & (inter > thr * union))
        new_work = jnp.where(suppress, f32(_NEG), work)

        valid = bs >= f32(score_thr)                               # (1, 1)
        row = jnp.where(sub8 == 4, bs, picked)                     # score slot
        row = jnp.where(valid, row, f32(-1.0))                     # (8, 1)
        new_out = jnp.where(lane_k == k, row, out_acc)             # (8, K_pad)
        return new_work, new_out

    if top_k <= 16:
        # full unroll: straight-line code, tiny live set (packed + work + out).
        carry = (work0, out0)
        for k in range(top_k):
            carry = body(k, carry)
        out_acc = carry[1]
    else:
        _, out_acc = jax.lax.fori_loop(0, top_k, body, (work0, out0), unroll=4)

    out_ref[...] = out_acc                                         # one dense store


def _rcnn_pp_pallas(hw, rois_t, scores_t, deltas_t, *, c_pad, top_k, k_pad,
                    nms_thr, score_thr, delta_mean, delta_std):
    b, _, n_pad = rois_t.shape
    kernel = functools.partial(
        _rcnn_pp_kernel, c_pad=c_pad, top_k=top_k, k_pad=k_pad,
        nms_thr=float(nms_thr), score_thr=float(score_thr),
        delta_mean=tuple(float(x) for x in delta_mean),
        delta_std=tuple(float(x) for x in delta_std))
    out = pl.pallas_call(
        kernel,
        out_shape=jax.ShapeDtypeStruct((b, 8, k_pad), jnp.float32),
        grid_spec=pltpu.PrefetchScalarGridSpec(
            num_scalar_prefetch=1,
            grid=(b,),
            in_specs=[
                pl.BlockSpec((None, 4, n_pad), lambda i, hw_ref: (i, 0, 0)),
                pl.BlockSpec((None, c_pad, n_pad), lambda i, hw_ref: (i, 0, 0)),
                pl.BlockSpec((None, 4 * c_pad, n_pad),
                             lambda i, hw_ref: (i, 0, 0)),
            ],
            out_specs=pl.BlockSpec((None, 8, k_pad),
                                   lambda i, hw_ref: (i, 0, 0)),
        ),
        compiler_params=pltpu.CompilerParams(
            dimension_semantics=("parallel",)),   # v7x: shard batch over 2 TCs
    )(hw, rois_t, scores_t, deltas_t)
    return out  # (B, 8, K_pad) lane-dense; caller slices + transposes


def _round_up(x, m):
    return ((x + m - 1) // m) * m


class RCNNPostProcessPallas:
    """JAX/Pallas port of hat RCNNPostProcess (stateless: no learned weights)."""

    def __init__(self, input_score_key, input_deltas_key, num_fg_classes,
                 image_hw=None, nms_threshold=0.3, box_filter_threshold=0.1,
                 post_nms_top_k=100, delta_mean=(0.0, 0.0, 0.0, 0.0),
                 delta_std=(1.0, 1.0, 1.0, 1.0)):
        assert len(delta_mean) == 4 and len(delta_std) == 4
        self.input_score_key = input_score_key
        self.input_deltas_key = input_deltas_key
        self.num_fg_classes = num_fg_classes
        self.image_hw = image_hw
        self.nms_threshold = nms_threshold
        self.box_filter_threshold = box_filter_threshold
        self.post_nms_top_k = post_nms_top_k
        self.delta_mean = delta_mean
        self.delta_std = delta_std

    def __call__(self, batch_rois, head_out, im_hw=None):
        assert isinstance(batch_rois, list) and batch_rois[0].shape[-1] == 4
        rois = jnp.stack(batch_rois, axis=0)                 # (B, N, 4)
        b, n, _ = rois.shape
        c = self.num_fg_classes
        bbox_score = head_out[self.input_score_key]
        bbox_deltas = head_out[self.input_deltas_key]
        assert bbox_score.shape[1] == c + 1
        assert bbox_deltas.shape[1] == (c + 1) * 4
        assert im_hw is not None or self.image_hw is not None

        scores = bbox_score.reshape(b, n, c + 1)
        deltas = bbox_deltas.reshape(b, n, c + 1, 4)         # class-major per box
        if im_hw is None:
            hw = jnp.tile(jnp.asarray(self.image_hw, jnp.int32)[None], (b, 1))
        else:
            hw = im_hw.reshape(b, 2).astype(jnp.int32)

        # Padded / aligned kernel layout:
        #  - lanes (ROIs) padded to multiple of 128; padded lanes get _NEG
        #    scores so they can never be selected,
        #  - background class dropped; classes padded to multiple of 8,
        #  - deltas coordinate-major: row = coord * C_pad + class.
        n_pad = max(128, _round_up(n, 128))
        c_pad = max(8, _round_up(c, 8))
        k_pad = max(128, _round_up(self.post_nms_top_k, 128))

        rois_t = jnp.transpose(rois, (0, 2, 1)).astype(jnp.float32)      # (B,4,N)
        rois_t = jnp.pad(rois_t, ((0, 0), (0, 0), (0, n_pad - n)))

        sc_t = jnp.transpose(scores[:, :, 1:], (0, 2, 1)).astype(jnp.float32)
        sc_t = jnp.pad(sc_t, ((0, 0), (0, c_pad - c), (0, n_pad - n)),
                       constant_values=_NEG)                              # (B,Cp,Np)

        dl_t = jnp.transpose(deltas[:, :, 1:, :], (0, 3, 2, 1)).astype(jnp.float32)
        dl_t = jnp.pad(dl_t, ((0, 0), (0, 0), (0, c_pad - c), (0, n_pad - n)))
        dl_t = dl_t.reshape(b, 4 * c_pad, n_pad)                          # (B,4Cp,Np)

        out_full = _rcnn_pp_pallas(
            hw, rois_t, sc_t, dl_t,
            c_pad=c_pad, top_k=self.post_nms_top_k, k_pad=k_pad,
            nms_thr=self.nms_threshold, score_thr=self.box_filter_threshold,
            delta_mean=self.delta_mean, delta_std=self.delta_std)
        out = jnp.transpose(out_full[:, :6, :self.post_nms_top_k], (0, 2, 1))
        return OrderedDict(rpp_pred=out)                     # (B, top_k, 6)


def _reference_numpy(rois, scores, deltas, hw, num_fg, top_k, nms_thr,
                     score_thr, mean, std):
    rois = np.asarray(rois, np.float32)
    scores = np.asarray(scores, np.float32)
    deltas = np.asarray(deltas, np.float32)
    hw = np.asarray(hw)
    b, n, _ = rois.shape
    out = np.full((b, top_k, 6), -1.0, dtype=np.float32)
    mean = np.asarray(mean, np.float32)
    std = np.asarray(std, np.float32)
    thr_f = np.float32(nms_thr)
    for bi in range(b):
        h, w = float(hw[bi, 0]), float(hw[bi, 1])
        sc = scores[bi]
        best_cls = np.argmax(sc[:, 1:], axis=1) + 1
        best_score = sc[np.arange(n), best_cls]
        dl = deltas[bi].reshape(n, num_fg + 1, 4)[np.arange(n), best_cls]
        dl = dl * std + mean
        x1, y1, x2, y2 = rois[bi, :, 0], rois[bi, :, 1], rois[bi, :, 2], rois[bi, :, 3]
        wb, hb = x2 - x1, y2 - y1
        cx, cy = x1 + 0.5 * wb, y1 + 0.5 * hb
        pcx, pcy = dl[:, 0] * wb + cx, dl[:, 1] * hb + cy
        pw, ph = np.exp(dl[:, 2]) * wb, np.exp(dl[:, 3]) * hb
        bx1 = np.clip(pcx - 0.5 * pw, 0, w - 1)
        bx2 = np.clip(pcx + 0.5 * pw, 0, w - 1)
        by1 = np.clip(pcy - 0.5 * ph, 0, h - 1)
        by2 = np.clip(pcy + 0.5 * ph, 0, h - 1)
        area = np.maximum(bx2 - bx1, 0) * np.maximum(by2 - by1, 0)
        work = np.where(best_score >= score_thr, best_score, _NEG)
        for k in range(top_k):
            i = int(np.argmax(work))
            bs = work[i]
            if bs >= score_thr:
                out[bi, k] = [bx1[i], by1[i], bx2[i], by2[i], bs, best_cls[i] - 1]
            xx1 = np.maximum(bx1, bx1[i]); yy1 = np.maximum(by1, by1[i])
            xx2 = np.minimum(bx2, bx2[i]); yy2 = np.minimum(by2, by2[i])
            inter = np.maximum(xx2 - xx1, 0) * np.maximum(yy2 - yy1, 0)
            union = area + area[i] - inter + np.float32(1e-6)
            supp = (best_cls == best_cls[i]) & (inter > thr_f * union)
            supp[i] = True
            work = np.where(supp, _NEG, work)
    return out


if __name__ == "__main__":
    key = jax.random.PRNGKey(0)
    k1, k2, k3, k4 = jax.random.split(key, 4)

    B, N, C, K = 2, 32, 4, 8   # batch, rois/img, num_fg_classes, post_nms_top_k
    xy = jax.random.uniform(k1, (B, N, 2), minval=0.0, maxval=90.0)
    wh = jax.random.uniform(k2, (B, N, 2), minval=8.0, maxval=40.0)
    rois = jnp.concatenate([xy, xy + wh], axis=-1)                 # (B, N, 4)
    batch_rois = [rois[i] for i in range(B)]

    bbox_score = jax.random.uniform(k3, (B * N, C + 1, 1, 1))      # NCHW 1x1
    bbox_deltas = jax.random.normal(k4, (B * N, (C + 1) * 4, 1, 1)) * 0.5
    im_hw = jnp.array([[128, 128], [112, 96]], jnp.int32).reshape(B, 1, 1, 2)

    delta_mean = (0.0, 0.0, 0.0, 0.0)
    delta_std = (0.1, 0.1, 0.2, 0.2)

    module = RCNNPostProcessPallas(
        input_score_key="bbox_score", input_deltas_key="bbox_deltas",
        num_fg_classes=C, nms_threshold=0.3, box_filter_threshold=0.1,
        post_nms_top_k=K, delta_mean=delta_mean, delta_std=delta_std)

    out = module(batch_rois,
                 {"bbox_score": bbox_score, "bbox_deltas": bbox_deltas},
                 im_hw)["rpp_pred"]
    out = jax.block_until_ready(out)
    assert out.shape == (B, K, 6) and out.dtype == jnp.float32

    ref = _reference_numpy(
        np.asarray(rois), np.asarray(bbox_score).reshape(B, N, C + 1),
        np.asarray(bbox_deltas).reshape(B, N, (C + 1) * 4),
        np.asarray(im_hw).reshape(B, 2), C, K, 0.3, 0.1, delta_mean, delta_std)
    np.testing.assert_allclose(np.asarray(out), ref, atol=2e-2, rtol=1e-3)

    print("KERNEL_OK")
</pallas_src>

<mosaic_0001>
module attributes {stable_mosaic.version = 11 : i64} {
  func.func @_rcnn_pp_kernel(%arg0: i32, %arg1: memref<2x2xi32, #tpu.memory_space<smem>>, %arg2: memref<1x4x128xf32, #tpu.memory_space<vmem>>, %arg3: memref<1x8x128xf32, #tpu.memory_space<vmem>>, %arg4: memref<1x32x128xf32, #tpu.memory_space<vmem>>, %arg5: memref<1x8x128xf32, #tpu.memory_space<vmem>>) attributes {dimension_semantics = [#tpu.dimension_semantics<parallel>], iteration_bounds = array<i64: 2>, scalar_prefetch = 1 : i64, scratch_operands = 0 : i64, tpu.core_type = #tpu.core_type<tc>, window_params = [{transform_indices = @transform_0, window_bounds = array<i64: 1, 4, 128>}, {transform_indices = @transform_1, window_bounds = array<i64: 1, 8, 128>}, {transform_indices = @transform_2, window_bounds = array<i64: 1, 32, 128>}, {transform_indices = @transform_3, window_bounds = array<i64: 1, 8, 128>}]} {
    %0 = arith.index_cast %arg0 : i32 to index
    %c0 = arith.constant 0 : index
    %1 = memref.load %arg1[%0, %c0] : memref<2x2xi32, #tpu.memory_space<smem>>
    %2 = arith.sitofp %1 : i32 to f32
    %3 = arith.index_cast %arg0 : i32 to index
    %c1 = arith.constant 1 : index
    %4 = memref.load %arg1[%3, %c1] : memref<2x2xi32, #tpu.memory_space<smem>>
    %5 = arith.sitofp %4 : i32 to f32
    %c0_0 = arith.constant 0 : index
    %c0_1 = arith.constant 0 : index
    %c0_2 = arith.constant 0 : index
    %6 = vector.load %arg3[%c0_0, %c0_1, %c0_2] : memref<1x8x128xf32, #tpu.memory_space<vmem>>, vector<1x8x128xf32>
    %7 = vector.shape_cast %6 : vector<1x8x128xf32> to vector<8x128xf32>
    %cst = arith.constant dense<0xFF800000> : vector<128xf32>
    %8 = vector.multi_reduction <maximumf>, %7, %cst [0] : vector<8x128xf32> to vector<128xf32>
    %9 = vector.shape_cast %8 : vector<128xf32> to vector<1x128xf32>
    %10 = tpu.iota {dimensions = array<i32: 0>} : vector<8x128xi32>
    %11 = vector.broadcast %9 : vector<1x128xf32> to vector<8x128xf32>
    %12 = arith.cmpf oeq, %7, %11 : vector<8x128xf32>
    %c8_i32 = arith.constant 8 : i32
    %13 = vector.broadcast %c8_i32 : i32 to vector<8x128xi32>
    %14 = arith.select %12, %10, %13 : vector<8x128xi1>, vector<8x128xi32>
    %cst_3 = arith.constant dense<2147483647> : vector<128xi32>
    %15 = vector.multi_reduction <minsi>, %14, %cst_3 [0] : vector<8x128xi32> to vector<128xi32>
    %16 = vector.shape_cast %15 : vector<128xi32> to vector<1x128xi32>
    %17 = vector.broadcast %16 : vector<1x128xi32> to vector<8x128xi32>
    %18 = arith.cmpi eq, %10, %17 : vector<8x128xi32>
    %19 = arith.extui %18 : vector<8x128xi1> to vector<8x128xi32>
    %20 = arith.sitofp %19 : vector<8x128xi32> to vector<8x128xf32>
    %c0_4 = arith.constant 0 : index
    %c0_5 = arith.constant 0 : index
    %c0_6 = arith.constant 0 : index
    %21 = vector.load %arg4[%c0_4, %c0_5, %c0_6] : memref<1x32x128xf32, #tpu.memory_space<vmem>>, vector<1x8x128xf32>
    %22 = vector.shape_cast %21 : vector<1x8x128xf32> to vector<8x128xf32>
    %23 = arith.mulf %20, %22 : vector<8x128xf32>
    %cst_7 = arith.constant dense<0.000000e+00> : vector<128xf32>
    %24 = vector.multi_reduction <add>, %23, %cst_7 [0] : vector<8x128xf32> to vector<128xf32>
    %25 = vector.shape_cast %24 : vector<128xf32> to vector<1x128xf32>
    %cst_8 = arith.constant 1.000000e-01 : f32
    %26 = vector.broadcast %cst_8 : f32 to vector<1x128xf32>
    %27 = arith.mulf %25, %26 : vector<1x128xf32>
    %cst_9 = arith.constant 0.000000e+00 : f32
    %28 = vector.broadcast %cst_9 : f32 to vector<1x128xf32>
    %29 = arith.addf %27, %28 : vector<1x128xf32>
    %c0_10 = arith.constant 0 : index
    %c8 = arith.constant 8 : index
    %c0_11 = arith.constant 0 : index
    %30 = vector.load %arg4[%c0_10, %c8, %c0_11] : memref<1x32x128xf32, #tpu.memory_space<vmem>>, vector<1x8x128xf32>
    %31 = vector.shape_cast %30 : vector<1x8x128xf32> to vector<8x128xf32>
    %32 = arith.mulf %20, %31 : vector<8x128xf32>
    %cst_12 = arith.constant dense<0.000000e+00> : vector<128xf32>
    %33 = vector.multi_reduction <add>, %32, %cst_12 [0] : vector<8x128xf32> to vector<128xf32>
    %34 = vector.shape_cast %33 : vector<128xf32> to vector<1x128xf32>
    %cst_13 = arith.constant 1.000000e-01 : f32
    %35 = vector.broadcast %cst_13 : f32 to vector<1x128xf32>
    %36 = arith.mulf %34, %35 : vector<1x128xf32>
    %cst_14 = arith.constant 0.000000e+00 : f32
    %37 = vector.broadcast %cst_14 : f32 to vector<1x128xf32>
    %38 = arith.addf %36, %37 : vector<1x128xf32>
    %c0_15 = arith.constant 0 : index
    %c16 = arith.constant 16 : index
    %c0_16 = arith.constant 0 : index
    %39 = vector.load %arg4[%c0_15, %c16, %c0_16] : memref<1x32x128xf32, #tpu.memory_space<vmem>>, vector<1x8x128xf32>
    %40 = vector.shape_cast %39 : vector<1x8x128xf32> to vector<8x128xf32>
    %41 = arith.mulf %20, %40 : vector<8x128xf32>
    %cst_17 = arith.constant dense<0.000000e+00> : vector<128xf32>
    %42 = vector.multi_reduction <add>, %41, %cst_17 [0] : vector<8x128xf32> to vector<128xf32>
    %43 = vector.shape_cast %42 : vector<128xf32> to vector<1x128xf32>
    %cst_18 = arith.constant 2.000000e-01 : f32
    %44 = vector.broadcast %cst_18 : f32 to vector<1x128xf32>
    %45 = arith.mulf %43, %44 : vector<1x128xf32>
    %cst_19 = arith.constant 0.000000e+00 : f32
    %46 = vector.broadcast %cst_19 : f32 to vector<1x128xf32>
    %47 = arith.addf %45, %46 : vector<1x128xf32>
    %c0_20 = arith.constant 0 : index
    %c24 = arith.constant 24 : index
    %c0_21 = arith.constant 0 : index
    %48 = vector.load %arg4[%c0_20, %c24, %c0_21] : memref<1x32x128xf32, #tpu.memory_space<vmem>>, vector<1x8x128xf32>
    %49 = vector.shape_cast %48 : vector<1x8x128xf32> to vector<8x128xf32>
    %50 = arith.mulf %20, %49 : vector<8x128xf32>
    %cst_22 = arith.constant dense<0.000000e+00> : vector<128xf32>
    %51 = vector.multi_reduction <add>, %50, %cst_22 [0] : vector<8x128xf32> to vector<128xf32>
    %52 = vector.shape_cast %51 : vector<128xf32> to vector<1x128xf32>
    %cst_23 = arith.constant 2.000000e-01 : f32
    %53 = vector.broadcast %cst_23 : f32 to vector<1x128xf32>
    %54 = arith.mulf %52, %53 : vector<1x128xf32>
    %cst_24 = arith.constant 0.000000e+00 : f32
    %55 = vector.broadcast %cst_24 : f32 to vector<1x128xf32>
    %56 = arith.addf %54, %55 : vector<1x128xf32>
    %57 = tpu.concatenate %29, %38 in 0 : vector<1x128xf32>, vector<1x128xf32> -> vector<2x128xf32>
    %58 = tpu.concatenate %47, %56 in 0 : vector<1x128xf32>, vector<1x128xf32> -> vector<2x128xf32>
    %c0_25 = arith.constant 0 : index
    %c0_26 = arith.constant 0 : index
    %c0_27 = arith.constant 0 : index
    %59 = vector.load %arg2[%c0_25, %c0_26, %c0_27] : memref<1x4x128xf32, #tpu.memory_space<vmem>>, vector<1x2x128xf32>
    %60 = vector.shape_cast %59 : vector<1x2x128xf32> to vector<2x128xf32>
    %c0_28 = arith.constant 0 : index
    %c2 = arith.constant 2 : index
    %c0_29 = arith.constant 0 : index
    %61 = vector.load %arg2[%c0_28, %c2, %c0_29] : memref<1x4x128xf32, #tpu.memory_space<vmem>>, vector<1x2x128xf32>
    %62 = vector.shape_cast %61 : vector<1x2x128xf32> to vector<2x128xf32>
    %63 = arith.subf %62, %60 : vector<2x128xf32>
    %cst_30 = arith.constant 5.000000e-01 : f32
    %64 = vector.broadcast %cst_30 : f32 to vector<2x128xf32>
    %65 = arith.mulf %64, %63 : vector<2x128xf32>
    %66 = arith.addf %60, %65 : vector<2x128xf32>
    %67 = arith.mulf %57, %63 : vector<2x128xf32>
    %68 = arith.addf %67, %66 : vector<2x128xf32>
    %69 = math.exp %58 : vector<2x128xf32>
    %70 = arith.mulf %69, %63 : vector<2x128xf32>
    %cst_31 = arith.constant 5.000000e-01 : f32
    %71 = vector.broadcast %cst_31 : f32 to vector<2x128xf32>
    %72 = arith.mulf %71, %70 : vector<2x128xf32>
    %73 = arith.subf %68, %72 : vector<2x128xf32>
    %cst_32 = arith.constant 5.000000e-01 : f32
    %74 = vector.broadcast %cst_32 : f32 to vector<2x128xf32>
    %75 = arith.mulf %74, %70 : vector<2x128xf32>
    %76 = arith.addf %68, %75 : vector<2x128xf32>
    %77 = tpu.iota {dimensions = array<i32: 0>} : vector<2x1xi32>
    %c0_i32 = arith.constant 0 : i32
    %78 = vector.broadcast %c0_i32 : i32 to vector<2x1xi32>
    %79 = arith.cmpi eq, %77, %78 : vector<2x1xi32>
    %cst_33 = arith.constant 1.000000e+00 : f32
    %80 = arith.subf %5, %cst_33 : f32
    %cst_34 = arith.constant 1.000000e+00 : f32
    %81 = arith.subf %2, %cst_34 : f32
    %82 = vector.broadcast %80 : f32 to vector<2x1xf32>
    %83 = vector.broadcast %81 : f32 to vector<2x1xf32>
    %84 = arith.select %79, %82, %83 : vector<2x1xi1>, vector<2x1xf32>
    %cst_35 = arith.constant 0.000000e+00 : f32
    %85 = vector.broadcast %cst_35 : f32 to vector<2x128xf32>
    %86 = arith.maximumf %85, %73 : vector<2x128xf32>
    %87 = vector.broadcast %84 : vector<2x1xf32> to vector<2x128xf32>
    %88 = arith.minimumf %87, %86 : vector<2x128xf32>
    %cst_36 = arith.constant 0.000000e+00 : f32
    %89 = vector.broadcast %cst_36 : f32 to vector<2x128xf32>
    %90 = arith.maximumf %89, %76 : vector<2x128xf32>
    %91 = vector.broadcast %84 : vector<2x1xf32> to vector<2x128xf32>
    %92 = arith.minimumf %91, %90 : vector<2x128xf32>
    %93 = arith.subf %92, %88 : vector<2x128xf32>
    %cst_37 = arith.constant 0.000000e+00 : f32
    %94 = vector.broadcast %cst_37 : f32 to vector<2x128xf32>
    %95 = arith.maximumf %93, %94 : vector<2x128xf32>
    %96 = vector.extract_strided_slice %95 {offsets = [0, 0], sizes = [1, 128], strides = [1, 1]} : vector<2x128xf32> to vector<1x128xf32>
    %97 = vector.extract_strided_slice %95 {offsets = [1, 0], sizes = [1, 128], strides = [1, 1]} : vector<2x128xf32> to vector<1x128xf32>
    %98 = arith.mulf %96, %97 : vector<1x128xf32>
    %99 = arith.sitofp %16 : vector<1x128xi32> to vector<1x128xf32>
    %cst_38 = arith.constant 0.000000e+00 : f32
    %100 = vector.broadcast %cst_38 : f32 to vector<2x128xf32>
    %101 = tpu.concatenate %88, %92, %98, %99, %100 in 0 : vector<2x128xf32>, vector<2x128xf32>, vector<1x128xf32>, vector<1x128xf32>, vector<2x128xf32> -> vector<8x128xf32>
    %cst_39 = arith.constant 1.000000e-01 : f32
    %102 = vector.broadcast %cst_39 : f32 to vector<1x128xf32>
    %103 = arith.cmpf oge, %9, %102 : vector<1x128xf32>
    %cst_40 = arith.constant -1.000000e+30 : f32
    %104 = vector.broadcast %cst_40 : f32 to vector<1x128xf32>
    %105 = arith.select %103, %9, %104 : vector<1x128xi1>, vector<1x128xf32>
    %106 = tpu.iota {dimensions = array<i32: 1>} : vector<1x128xi32>
    %107 = tpu.iota {dimensions = array<i32: 0>} : vector<8x1xi32>
    %cst_41 = arith.constant -1.000000e+00 : f32
    %108 = vector.broadcast %cst_41 : f32 to vector<8x128xf32>
    %cst_42 = arith.constant dense<0xFF800000> : vector<1xf32>
    %109 = vector.multi_reduction <maximumf>, %105, %cst_42 [1] : vector<1x128xf32> to vector<1xf32>
    %110 = vector.shape_cast %109 : vector<1xf32> to vector<1x1xf32>
    %111 = vector.broadcast %110 : vector<1x1xf32> to vector<1x128xf32>
    %112 = arith.cmpf oeq, %105, %111 : vector<1x128xf32>
    %cst_43 = arith.constant 0.000000e+00 : f32
    %113 = vector.shape_cast %112 : vector<1x128xi1> to vector<1x128xi1>
    %114 = vector.broadcast %113 : vector<1x128xi1> to vector<8x128xi1>
    %115 = vector.broadcast %cst_43 : f32 to vector<8x128xf32>
    %116 = arith.select %114, %101, %115 : vector<8x128xi1>, vector<8x128xf32>
    %cst_44 = arith.constant dense<0.000000e+00> : vector<8xf32>
    %117 = vector.multi_reduction <add>, %116, %cst_44 [1] : vector<8x128xf32> to vector<8xf32>
    %118 = vector.shape_cast %117 : vector<8xf32> to vector<8x1xf32>
    %119 = arith.extui %112 : vector<1x128xi1> to vector<1x128xi32>
    %120 = arith.sitofp %119 : vector<1x128xi32> to vector<1x128xf32>
    %cst_45 = arith.constant dense<0.000000e+00> : vector<1xf32>
    %121 = vector.multi_reduction <add>, %120, %cst_45 [1] : vector<1x128xf32> to vector<1xf32>
    %122 = vector.shape_cast %121 : vector<1xf32> to vector<1x1xf32>
    %123 = vector.broadcast %122 : vector<1x1xf32> to vector<8x1xf32>
    %124 = arith.divf %118, %123 : vector<8x1xf32>
    %125 = vector.extract_strided_slice %124 {offsets = [0, 0], sizes = [2, 1], strides = [1, 1]} : vector<8x1xf32> to vector<2x1xf32>
    %126 = vector.extract_strided_slice %124 {offsets = [2, 0], sizes = [2, 1], strides = [1, 1]} : vector<8x1xf32> to vector<2x1xf32>
    %127 = vector.extract_strided_slice %124 {offsets = [4, 0], sizes = [1, 1], strides = [1, 1]} : vector<8x1xf32> to vector<1x1xf32>
    %128 = vector.extract_strided_slice %124 {offsets = [5, 0], sizes = [1, 1], strides = [1, 1]} : vector<8x1xf32> to vector<1x1xf32>
    %129 = vector.extract_strided_slice %101 {offsets = [0, 0], sizes = [2, 128], strides = [1, 1]} : vector<8x128xf32> to vector<2x128xf32>
    %130 = vector.extract_strided_slice %101 {offsets = [2, 0], sizes = [2, 128], strides = [1, 1]} : vector<8x128xf32> to vector<2x128xf32>
    %131 = vector.extract_strided_slice %101 {offsets = [4, 0], sizes = [1, 128], strides = [1, 1]} : vector<8x128xf32> to vector<1x128xf32>
    %132 = vector.extract_strided_slice %101 {offsets = [5, 0], sizes = [1, 128], strides = [1, 1]} : vector<8x128xf32> to vector<1x128xf32>
    %133 = vector.broadcast %125 : vector<2x1xf32> to vector<2x128xf32>
    %134 = arith.maximumf %129, %133 : vector<2x128xf32>
    %135 = vector.broadcast %126 : vector<2x1xf32> to vector<2x128xf32>
    %136 = arith.minimumf %130, %135 : vector<2x128xf32>
    %137 = arith.subf %136, %134 : vector<2x128xf32>
    %cst_46 = arith.constant 0.000000e+00 : f32
    %138 = vector.broadcast %cst_46 : f32 to vector<2x128xf32>
    %139 = arith.maximumf %137, %138 : vector<2x128xf32>
    %140 = vector.extract_strided_slice %139 {offsets = [0, 0], sizes = [1, 128], strides = [1, 1]} : vector<2x128xf32> to vector<1x128xf32>
    %141 = vector.extract_strided_slice %139 {offsets = [1, 0], sizes = [1, 128], strides = [1, 1]} : vector<2x128xf32> to vector<1x128xf32>
    %142 = arith.mulf %140, %141 : vector<1x128xf32>
    %143 = vector.broadcast %127 : vector<1x1xf32> to vector<1x128xf32>
    %144 = arith.addf %131, %143 : vector<1x128xf32>
    %145 = arith.subf %144, %142 : vector<1x128xf32>
    %cst_47 = arith.constant 9.99999997E-7 : f32
    %146 = vector.broadcast %cst_47 : f32 to vector<1x128xf32>
    %147 = arith.addf %145, %146 : vector<1x128xf32>
    %148 = vector.broadcast %128 : vector<1x1xf32> to vector<1x128xf32>
    %149 = arith.cmpf oeq, %132, %148 : vector<1x128xf32>
    %cst_48 = arith.constant 3.000000e-01 : f32
    %150 = vector.broadcast %cst_48 : f32 to vector<1x128xf32>
    %151 = arith.mulf %150, %147 : vector<1x128xf32>
    %152 = arith.cmpf ogt, %142, %151 : vector<1x128xf32>
    %153 = arith.andi %149, %152 : vector<1x128xi1>
    %154 = arith.ori %112, %153 : vector<1x128xi1>
    %cst_49 = arith.constant -1.000000e+30 : f32
    %155 = vector.broadcast %cst_49 : f32 to vector<1x128xf32>
    %156 = arith.select %154, %155, %105 : vector<1x128xi1>, vector<1x128xf32>
    %cst_50 = arith.constant 1.000000e-01 : f32
    %157 = vector.broadcast %cst_50 : f32 to vector<1x1xf32>
    %158 = arith.cmpf oge, %110, %157 : vector<1x1xf32>
    %c4_i32 = arith.constant 4 : i32
    %159 = vector.broadcast %c4_i32 : i32 to vector<8x1xi32>
    %160 = arith.cmpi eq, %107, %159 : vector<8x1xi32>
    %161 = vector.shape_cast %110 : vector<1x1xf32> to vector<1x1xf32>
    %162 = vector.broadcast %161 : vector<1x1xf32> to vector<8x1xf32>
    %163 = arith.select %160, %162, %124 : vector<8x1xi1>, vector<8x1xf32>
    %cst_51 = arith.constant -1.000000e+00 : f32
    %164 = vector.shape_cast %158 : vector<1x1xi1> to vector<1x1xi1>
    %165 = vector.broadcast %164 : vector<1x1xi1> to vector<8x1xi1>
    %166 = vector.broadcast %cst_51 : f32 to vector<8x1xf32>
    %167 = arith.select %165, %163, %166 : vector<8x1xi1>, vector<8x1xf32>
    %c0_i32_52 = arith.constant 0 : i32
    %168 = vector.broadcast %c0_i32_52 : i32 to vector<1x128xi32>
    %169 = arith.cmpi eq, %106, %168 : vector<1x128xi32>
    %170 = vector.shape_cast %169 : vector<1x128xi1> to vector<1x128xi1>
    %171 = vector.broadcast %170 : vector<1x128xi1> to vector<8x128xi1>
    %172 = vector.shape_cast %167 : vector<8x1xf32> to vector<8x1xf32>
    %173 = vector.broadcast %172 : vector<8x1xf32> to vector<8x128xf32>
    %174 = arith.select %171, %173, %108 : vector<8x128xi1>, vector<8x128xf32>
    %cst_53 = arith.constant dense<0xFF800000> : vector<1xf32>
    %175 = vector.multi_reduction <maximumf>, %156, %cst_53 [1] : vector<1x128xf32> to vector<1xf32>
    %176 = vector.shape_cast %175 : vector<1xf32> to vector<1x1xf32>
    %177 = vector.broadcast %176 : vector<1x1xf32> to vector<1x128xf32>
    %178 = arith.cmpf oeq, %156, %177 : vector<1x128xf32>
    %cst_54 = arith.constant 0.000000e+00 : f32
    %179 = vector.shape_cast %178 : vector<1x128xi1> to vector<1x128xi1>
    %180 = vector.broadcast %179 : vector<1x128xi1> to vector<8x128xi1>
    %181 = vector.broadcast %cst_54 : f32 to vector<8x128xf32>
    %182 = arith.select %180, %101, %181 : vector<8x128xi1>, vector<8x128xf32>
    %cst_55 = arith.constant dense<0.000000e+00> : vector<8xf32>
    %183 = vector.multi_reduction <add>, %182, %cst_55 [1] : vector<8x128xf32> to vector<8xf32>
    %184 = vector.shape_cast %183 : vector<8xf32> to vector<8x1xf32>
    %185 = arith.extui %178 : vector<1x128xi1> to vector<1x128xi32>
    %186 = arith.sitofp %185 : vector<1x128xi32> to vector<1x128xf32>
    %cst_56 = arith.constant dense<0.000000e+00> : vector<1xf32>
    %187 = vector.multi_reduction <add>, %186, %cst_56 [1] : vector<1x128xf32> to vector<1xf32>
    %188 = vector.shape_cast %187 : vector<1xf32> to vector<1x1xf32>
    %189 = vector.broadcast %188 : vector<1x1xf32> to vector<8x1xf32>
    %190 = arith.divf %184, %189 : vector<8x1xf32>
    %191 = vector.extract_strided_slice %190 {offsets = [0, 0], sizes = [2, 1], strides = [1, 1]} : vector<8x1xf32> to vector<2x1xf32>
    %192 = vector.extract_strided_slice %190 {offsets = [2, 0], sizes = [2, 1], strides = [1, 1]} : vector<8x1xf32> to vector<2x1xf32>
    %193 = vector.extract_strided_slice %190 {offsets = [4, 0], sizes = [1, 1], strides = [1, 1]} : vector<8x1xf32> to vector<1x1xf32>
    %194 = vector.extract_strided_slice %190 {offsets = [5, 0], sizes = [1, 1], strides = [1, 1]} : vector<8x1xf32> to vector<1x1xf32>
    %195 = vector.extract_strided_slice %101 {offsets = [0, 0], sizes = [2, 128], strides = [1, 1]} : vector<8x128xf32> to vector<2x128xf32>
    %196 = vector.extract_strided_slice %101 {offsets = [2, 0], sizes = [2, 128], strides = [1, 1]} : vector<8x128xf32> to vector<2x128xf32>
    %197 = vector.extract_strided_slice %101 {offsets = [4, 0], sizes = [1, 128], strides = [1, 1]} : vector<8x128xf32> to vector<1x128xf32>
    %198 = vector.extract_strided_slice %101 {offsets = [5, 0], sizes = [1, 128], strides = [1, 1]} : vector<8x128xf32> to vector<1x128xf32>
    %199 = vector.broadcast %191 : vector<2x1xf32> to vector<2x128xf32>
    %200 = arith.maximumf %195, %199 : vector<2x128xf32>
    %201 = vector.broadcast %192 : vector<2x1xf32> to vector<2x128xf32>
    %202 = arith.minimumf %196, %201 : vector<2x128xf32>
    %203 = arith.subf %202, %200 : vector<2x128xf32>
    %cst_57 = arith.constant 0.000000e+00 : f32
    %204 = vector.broadcast %cst_57 : f32 to vector<2x128xf32>
    %205 = arith.maximumf %203, %204 : vector<2x128xf32>
    %206 = vector.extract_strided_slice %205 {offsets = [0, 0], sizes = [1, 128], strides = [1, 1]} : vector<2x128xf32> to vector<1x128xf32>
    %207 = vector.extract_strided_slice %205 {offsets = [1, 0], sizes = [1, 128], strides = [1, 1]} : vector<2x128xf32> to vector<1x128xf32>
    %208 = arith.mulf %206, %207 : vector<1x128xf32>
    %209 = vector.broadcast %193 : vector<1x1xf32> to vector<1x128xf32>
    %210 = arith.addf %197, %209 : vector<1x128xf32>
    %211 = arith.subf %210, %208 : vector<1x128xf32>
    %cst_58 = arith.constant 9.99999997E-7 : f32
    %212 = vector.broadcast %cst_58 : f32 to vector<1x128xf32>
    %213 = arith.addf %211, %212 : vector<1x128xf32>
    %214 = vector.broadcast %194 : vector<1x1xf32> to vector<1x128xf32>
    %215 = arith.cmpf oeq, %198, %214 : vector<1x128xf32>
    %cst_59 = arith.constant 3.000000e-01 : f32
    %216 = vector.broadcast %cst_59 : f32 to vector<1x128xf32>
    %217 = arith.mulf %216, %213 : vector<1x128xf32>
    %218 = arith.cmpf ogt, %208, %217 : vector<1x128xf32>
    %219 = arith.andi %215, %218 : vector<1x128xi1>
    %220 = arith.ori %178, %219 : vector<1x128xi1>
    %cst_60 = arith.constant -1.000000e+30 : f32
    %221 = vector.broadcast %cst_60 : f32 to vector<1x128xf32>
    %222 = arith.select %220, %221, %156 : vector<1x128xi1>, vector<1x128xf32>
    %cst_61 = arith.constant 1.000000e-01 : f32
    %223 = vector.broadcast %cst_61 : f32 to vector<1x1xf32>
    %224 = arith.cmpf oge, %176, %223 : vector<1x1xf32>
    %c4_i32_62 = arith.constant 4 : i32
    %225 = vector.broadcast %c4_i32_62 : i32 to vector<8x1xi32>
    %226 = arith.cmpi eq, %107, %225 : vector<8x1xi32>
    %227 = vector.shape_cast %176 : vector<1x1xf32> to vector<1x1xf32>
    %228 = vector.broadcast %227 : vector<1x1xf32> to vector<8x1xf32>
    %229 = arith.select %226, %228, %190 : vector<8x1xi1>, vector<8x1xf32>
    %cst_63 = arith.constant -1.000000e+00 : f32
    %230 = vector.shape_cast %224 : vector<1x1xi1> to vector<1x1xi1>
    %231 = vector.broadcast %230 : vector<1x1xi1> to vector<8x1xi1>
    %232 = vector.broadcast %cst_63 : f32 to vector<8x1xf32>
    %233 = arith.select %231, %229, %232 : vector<8x1xi1>, vector<8x1xf32>
    %c1_i32 = arith.constant 1 : i32
    %234 = vector.broadcast %c1_i32 : i32 to vector<1x128xi32>
    %235 = arith.cmpi eq, %106, %234 : vector<1x128xi32>
    %236 = vector.shape_cast %235 : vector<1x128xi1> to vector<1x128xi1>
    %237 = vector.broadcast %236 : vector<1x128xi1> to vector<8x128xi1>
    %238 = vector.shape_cast %233 : vector<8x1xf32> to vector<8x1xf32>
    %239 = vector.broadcast %238 : vector<8x1xf32> to vector<8x128xf32>
    %240 = arith.select %237, %239, %174 : vector<8x128xi1>, vector<8x128xf32>
    %cst_64 = arith.constant dense<0xFF800000> : vector<1xf32>
    %241 = vector.multi_reduction <maximumf>, %222, %cst_64 [1] : vector<1x128xf32> to vector<1xf32>
    %242 = vector.shape_cast %241 : vector<1xf32> to vector<1x1xf32>
    %243 = vector.broadcast %242 : vector<1x1xf32> to vector<1x128xf32>
    %244 = arith.cmpf oeq, %222, %243 : vector<1x128xf32>
    %cst_65 = arith.constant 0.000000e+00 : f32
    %245 = vector.shape_cast %244 : vector<1x128xi1> to vector<1x128xi1>
    %246 = vector.broadcast %245 : vector<1x128xi1> to vector<8x128xi1>
    %247 = vector.broadcast %cst_65 : f32 to vector<8x128xf32>
    %248 = arith.select %246, %101, %247 : vector<8x128xi1>, vector<8x128xf32>
    %cst_66 = arith.constant dense<0.000000e+00> : vector<8xf32>
    %249 = vector.multi_reduction <add>, %248, %cst_66 [1] : vector<8x128xf32> to vector<8xf32>
    %250 = vector.shape_cast %249 : vector<8xf32> to vector<8x1xf32>
    %251 = arith.extui %244 : vector<1x128xi1> to vector<1x128xi32>
    %252 = arith.sitofp %251 : vector<1x128xi32> to vector<1x128xf32>
    %cst_67 = arith.constant dense<0.000000e+00> : vector<1xf32>
    %253 = vector.multi_reduction <add>, %252, %cst_67 [1] : vector<1x128xf32> to vector<1xf32>
    %254 = vector.shape_cast %253 : vector<1xf32> to vector<1x1xf32>
    %255 = vector.broadcast %254 : vector<1x1xf32> to vector<8x1xf32>
    %256 = arith.divf %250, %255 : vector<8x1xf32>
    %257 = vector.extract_strided_slice %256 {offsets = [0, 0], sizes = [2, 1], strides = [1, 1]} : vector<8x1xf32> to vector<2x1xf32>
    %258 = vector.extract_strided_slice %256 {offsets = [2, 0], sizes = [2, 1], strides = [1, 1]} : vector<8x1xf32> to vector<2x1xf32>
    %259 = vector.extract_strided_slice %256 {offsets = [4, 0], sizes = [1, 1], strides = [1, 1]} : vector<8x1xf32> to vector<1x1xf32>
    %260 = vector.extract_strided_slice %256 {offsets = [5, 0], sizes = [1, 1], strides = [1, 1]} : vector<8x1xf32> to vector<1x1xf32>
    %261 = vector.extract_strided_slice %101 {offsets = [0, 0], sizes = [2, 128], strides = [1, 1]} : vector<8x128xf32> to vector<2x128xf32>
    %262 = vector.extract_strided_slice %101 {offsets = [2, 0], sizes = [2, 128], strides = [1, 1]} : vector<8x128xf32> to vector<2x128xf32>
    %263 = vector.extract_strided_slice %101 {offsets = [4, 0], sizes = [1, 128], strides = [1, 1]} : vector<8x128xf32> to vector<1x128xf32>
    %264 = vector.extract_strided_slice %101 {offsets = [5, 0], sizes = [1, 128], strides = [1, 1]} : vector<8x128xf32> to vector<1x128xf32>
    %265 = vector.broadcast %257 : vector<2x1xf32> to vector<2x128xf32>
    %266 = arith.maximumf %261, %265 : vector<2x128xf32>
    %267 = vector.broadcast %258 : vector<2x1xf32> to vector<2x128xf32>
    %268 = arith.minimumf %262, %267 : vector<2x128xf32>
    %269 = arith.subf %268, %266 : vector<2x128xf32>
    %cst_68 = arith.constant 0.000000e+00 : f32
    %270 = vector.broadcast %cst_68 : f32 to vector<2x128xf32>
    %271 = arith.maximumf %269, %270 : vector<2x128xf32>
    %272 = vector.extract_strided_slice %271 {offsets = [0, 0], sizes = [1, 128], strides = [1, 1]} : vector<2x128xf32> to vector<1x128xf32>
    %273 = vector.extract_strided_slice %271 {offsets = [1, 0], sizes = [1, 128], strides = [1, 1]} : vector<2x128xf32> to vector<1x128xf32>
    %274 = arith.mulf %272, %273 : vector<1x128xf32>
    %275 = vector.broadcast %259 : vector<1x1xf32> to vector<1x128xf32>
    %276 = arith.addf %263, %275 : vector<1x128xf32>
    %277 = arith.subf %276, %274 : vector<1x128xf32>
    %cst_69 = arith.constant 9.99999997E-7 : f32
    %278 = vector.broadcast %cst_69 : f32 to vector<1x128xf32>
    %279 = arith.addf %277, %278 : vector<1x128xf32>
    %280 = vector.broadcast %260 : vector<1x1xf32> to vector<1x128xf32>
    %281 = arith.cmpf oeq, %264, %280 : vector<1x128xf32>
    %cst_70 = arith.constant 3.000000e-01 : f32
    %282 = vector.broadcast %cst_70 : f32 to vector<1x128xf32>
    %283 = arith.mulf %282, %279 : vector<1x128xf32>
    %284 = arith.cmpf ogt, %274, %283 : vector<1x128xf32>
    %285 = arith.andi %281, %284 : vector<1x128xi1>
    %286 = arith.ori %244, %285 : vector<1x128xi1>
    %cst_71 = arith.constant -1.000000e+30 : f32
    %287 = vector.broadcast %cst_71 : f32 to vector<1x128xf32>
    %288 = arith.select %286, %287, %222 : vector<1x128xi1>, vector<1x128xf32>
    %cst_72 = arith.constant 1.000000e-01 : f32
    %289 = vector.broadcast %cst_72 : f32 to vector<1x1xf32>
    %290 = arith.cmpf oge, %242, %289 : vector<1x1xf32>
    %c4_i32_73 = arith.constant 4 : i32
    %291 = vector.broadcast %c4_i32_73 : i32 to vector<8x1xi32>
    %292 = arith.cmpi eq, %107, %291 : vector<8x1xi32>
    %293 = vector.shape_cast %242 : vector<1x1xf32> to vector<1x1xf32>
    %294 = vector.broadcast %293 : vector<1x1xf32> to vector<8x1xf32>
    %295 = arith.select %292, %294, %256 : vector<8x1xi1>, vector<8x1xf32>
    %cst_74 = arith.constant -1.000000e+00 : f32
    %296 = vector.shape_cast %290 : vector<1x1xi1> to vector<1x1xi1>
    %297 = vector.broadcast %296 : vector<1x1xi1> to vector<8x1xi1>
    %298 = vector.broadcast %cst_74 : f32 to vector<8x1xf32>
    %299 = arith.select %297, %295, %298 : vector<8x1xi1>, vector<8x1xf32>
    %c2_i32 = arith.constant 2 : i32
    %300 = vector.broadcast %c2_i32 : i32 to vector<1x128xi32>
    %301 = arith.cmpi eq, %106, %300 : vector<1x128xi32>
    %302 = vector.shape_cast %301 : vector<1x128xi1> to vector<1x128xi1>
    %303 = vector.broadcast %302 : vector<1x128xi1> to vector<8x128xi1>
    %304 = vector.shape_cast %299 : vector<8x1xf32> to vector<8x1xf32>
    %305 = vector.broadcast %304 : vector<8x1xf32> to vector<8x128xf32>
    %306 = arith.select %303, %305, %240 : vector<8x128xi1>, vector<8x128xf32>
    %cst_75 = arith.constant dense<0xFF800000> : vector<1xf32>
    %307 = vector.multi_reduction <maximumf>, %288, %cst_75 [1] : vector<1x128xf32> to vector<1xf32>
    %308 = vector.shape_cast %307 : vector<1xf32> to vector<1x1xf32>
    %309 = vector.broadcast %308 : vector<1x1xf32> to vector<1x128xf32>
    %310 = arith.cmpf oeq, %288, %309 : vector<1x128xf32>
    %cst_76 = arith.constant 0.000000e+00 : f32
    %311 = vector.shape_cast %310 : vector<1x128xi1> to vector<1x128xi1>
    %312 = vector.broadcast %311 : vector<1x128xi1> to vector<8x128xi1>
    %313 = vector.broadcast %cst_76 : f32 to vector<8x128xf32>
    %314 = arith.select %312, %101, %313 : vector<8x128xi1>, vector<8x128xf32>
    %cst_77 = arith.constant dense<0.000000e+00> : vector<8xf32>
    %315 = vector.multi_reduction <add>, %314, %cst_77 [1] : vector<8x128xf32> to vector<8xf32>
    %316 = vector.shape_cast %315 : vector<8xf32> to vector<8x1xf32>
    %317 = arith.extui %310 : vector<1x128xi1> to vector<1x128xi32>
    %318 = arith.sitofp %317 : vector<1x128xi32> to vector<1x128xf32>
    %cst_78 = arith.constant dense<0.000000e+00> : vector<1xf32>
    %319 = vector.multi_reduction <add>, %318, %cst_78 [1] : vector<1x128xf32> to vector<1xf32>
    %320 = vector.shape_cast %319 : vector<1xf32> to vector<1x1xf32>
    %321 = vector.broadcast %320 : vector<1x1xf32> to vector<8x1xf32>
    %322 = arith.divf %316, %321 : vector<8x1xf32>
    %323 = vector.extract_strided_slice %322 {offsets = [0, 0], sizes = [2, 1], strides = [1, 1]} : vector<8x1xf32> to vector<2x1xf32>
    %324 = vector.extract_strided_slice %322 {offsets = [2, 0], sizes = [2, 1], strides = [1, 1]} : vector<8x1xf32> to vector<2x1xf32>
    %325 = vector.extract_strided_slice %322 {offsets = [4, 0], sizes = [1, 1], strides = [1, 1]} : vector<8x1xf32> to vector<1x1xf32>
    %326 = vector.extract_strided_slice %322 {offsets = [5, 0], sizes = [1, 1], strides = [1, 1]} : vector<8x1xf32> to vector<1x1xf32>
    %327 = vector.extract_strided_slice %101 {offsets = [0, 0], sizes = [2, 128], strides = [1, 1]} : vector<8x128xf32> to vector<2x128xf32>
    %328 = vector.extract_strided_slice %101 {offsets = [2, 0], sizes = [2, 128], strides = [1, 1]} : vector<8x128xf32> to vector<2x128xf32>
    %329 = vector.extract_strided_slice %101 {offsets = [4, 0], sizes = [1, 128], strides = [1, 1]} : vector<8x128xf32> to vector<1x128xf32>
    %330 = vector.extract_strided_slice %101 {offsets = [5, 0], sizes = [1, 128], strides = [1, 1]} : vector<8x128xf32> to vector<1x128xf32>
    %331 = vector.broadcast %323 : vector<2x1xf32> to vector<2x128xf32>
    %332 = arith.maximumf %327, %331 : vector<2x128xf32>
    %333 = vector.broadcast %324 : vector<2x1xf32> to vector<2x128xf32>
    %334 = arith.minimumf %328, %333 : vector<2x128xf32>
    %335 = arith.subf %334, %332 : vector<2x128xf32>
    %cst_79 = arith.constant 0.000000e+00 : f32
    %336 = vector.broadcast %cst_79 : f32 to vector<2x128xf32>
    %337 = arith.maximumf %335, %336 : vector<2x128xf32>
    %338 = vector.extract_strided_slice %337 {offsets = [0, 0], sizes = [1, 128], strides = [1, 1]} : vector<2x128xf32> to vector<1x128xf32>
    %339 = vector.extract_strided_slice %337 {offsets = [1, 0], sizes = [1, 128], strides = [1, 1]} : vector<2x128xf32> to vector<1x128xf32>
    %340 = arith.mulf %338, %339 : vector<1x128xf32>
    %341 = vector.broadcast %325 : vector<1x1xf32> to vector<1x128xf32>
    %342 = arith.addf %329, %341 : vector<1x128xf32>
    %343 = arith.subf %342, %340 : vector<1x128xf32>
    %cst_80 = arith.constant 9.99999997E-7 : f32
    %344 = vector.broadcast %cst_80 : f32 to vector<1x128xf32>
    %345 = arith.addf %343, %344 : vector<1x128xf32>
    %346 = vector.broadcast %326 : vector<1x1xf32> to vector<1x128xf32>
    %347 = arith.cmpf oeq, %330, %346 : vector<1x128xf32>
    %cst_81 = arith.constant 3.000000e-01 : f32
    %348 = vector.broadcast %cst_81 : f32 to vector<1x128xf32>
    %349 = arith.mulf %348, %345 : vector<1x128xf32>
    %350 = arith.cmpf ogt, %340, %349 : vector<1x128xf32>
    %351 = arith.andi %347, %350 : vector<1x128xi1>
    %352 = arith.ori %310, %351 : vector<1x128xi1>
    %cst_82 = arith.constant -1.000000e+30 : f32
    %353 = vector.broadcast %cst_82 : f32 to vector<1x128xf32>
    %354 = arith.select %352, %353, %288 : vector<1x128xi1>, vector<1x128xf32>
    %cst_83 = arith.constant 1.000000e-01 : f32
    %355 = vector.broadcast %cst_83 : f32 to vector<1x1xf32>
    %356 = arith.cmpf oge, %308, %355 : vector<1x1xf32>
    %c4_i32_84 = arith.constant 4 : i32
    %357 = vector.broadcast %c4_i32_84 : i32 to vector<8x1xi32>
    %358 = arith.cmpi eq, %107, %357 : vector<8x1xi32>
    %359 = vector.shape_cast %308 : vector<1x1xf32> to vector<1x1xf32>
    %360 = vector.broadcast %359 : vector<1x1xf32> to vector<8x1xf32>
    %361 = arith.select %358, %360, %322 : vector<8x1xi1>, vector<8x1xf32>
    %cst_85 = arith.constant -1.000000e+00 : f32
    %362 = vector.shape_cast %356 : vector<1x1xi1> to vector<1x1xi1>
    %363 = vector.broadcast %362 : vector<1x1xi1> to vector<8x1xi1>
    %364 = vector.broadcast %cst_85 : f32 to vector<8x1xf32>
    %365 = arith.select %363, %361, %364 : vector<8x1xi1>, vector<8x1xf32>
    %c3_i32 = arith.constant 3 : i32
    %366 = vector.broadcast %c3_i32 : i32 to vector<1x128xi32>
    %367 = arith.cmpi eq, %106, %366 : vector<1x128xi32>
    %368 = vector.shape_cast %367 : vector<1x128xi1> to vector<1x128xi1>
    %369 = vector.broadcast %368 : vector<1x128xi1> to vector<8x128xi1>
    %370 = vector.shape_cast %365 : vector<8x1xf32> to vector<8x1xf32>
    %371 = vector.broadcast %370 : vector<8x1xf32> to vector<8x128xf32>
    %372 = arith.select %369, %371, %306 : vector<8x128xi1>, vector<8x128xf32>
    %cst_86 = arith.constant dense<0xFF800000> : vector<1xf32>
    %373 = vector.multi_reduction <maximumf>, %354, %cst_86 [1] : vector<1x128xf32> to vector<1xf32>
    %374 = vector.shape_cast %373 : vector<1xf32> to vector<1x1xf32>
    %375 = vector.broadcast %374 : vector<1x1xf32> to vector<1x128xf32>
    %376 = arith.cmpf oeq, %354, %375 : vector<1x128xf32>
    %cst_87 = arith.constant 0.000000e+00 : f32
    %377 = vector.shape_cast %376 : vector<1x128xi1> to vector<1x128xi1>
    %378 = vector.broadcast %377 : vector<1x128xi1> to vector<8x128xi1>
    %379 = vector.broadcast %cst_87 : f32 to vector<8x128xf32>
    %380 = arith.select %378, %101, %379 : vector<8x128xi1>, vector<8x128xf32>
    %cst_88 = arith.constant dense<0.000000e+00> : vector<8xf32>
    %381 = vector.multi_reduction <add>, %380, %cst_88 [1] : vector<8x128xf32> to vector<8xf32>
    %382 = vector.shape_cast %381 : vector<8xf32> to vector<8x1xf32>
    %383 = arith.extui %376 : vector<1x128xi1> to vector<1x128xi32>
    %384 = arith.sitofp %383 : vector<1x128xi32> to vector<1x128xf32>
    %cst_89 = arith.constant dense<0.000000e+00> : vector<1xf32>
    %385 = vector.multi_reduction <add>, %384, %cst_89 [1] : vector<1x128xf32> to vector<1xf32>
    %386 = vector.shape_cast %385 : vector<1xf32> to vector<1x1xf32>
    %387 = vector.broadcast %386 : vector<1x1xf32> to vector<8x1xf32>
    %388 = arith.divf %382, %387 : vector<8x1xf32>
    %389 = vector.extract_strided_slice %388 {offsets = [0, 0], sizes = [2, 1], strides = [1, 1]} : vector<8x1xf32> to vector<2x1xf32>
    %390 = vector.extract_strided_slice %388 {offsets = [2, 0], sizes = [2, 1], strides = [1, 1]} : vector<8x1xf32> to vector<2x1xf32>
    %391 = vector.extract_strided_slice %388 {offsets = [4, 0], sizes = [1, 1], strides = [1, 1]} : vector<8x1xf32> to vector<1x1xf32>
    %392 = vector.extract_strided_slice %388 {offsets = [5, 0], sizes = [1, 1], strides = [1, 1]} : vector<8x1xf32> to vector<1x1xf32>
    %393 = vector.extract_strided_slice %101 {offsets = [0, 0], sizes = [2, 128], strides = [1, 1]} : vector<8x128xf32> to vector<2x128xf32>
    %394 = vector.extract_strided_slice %101 {offsets = [2, 0], sizes = [2, 128], strides = [1, 1]} : vector<8x128xf32> to vector<2x128xf32>
    %395 = vector.extract_strided_slice %101 {offsets = [4, 0], sizes = [1, 128], strides = [1, 1]} : vector<8x128xf32> to vector<1x128xf32>
    %396 = vector.extract_strided_slice %101 {offsets = [5, 0], sizes = [1, 128], strides = [1, 1]} : vector<8x128xf32> to vector<1x128xf32>
    %397 = vector.broadcast %389 : vector<2x1xf32> to vector<2x128xf32>
    %398 = arith.maximumf %393, %397 : vector<2x128xf32>
    %399 = vector.broadcast %390 : vector<2x1xf32> to vector<2x128xf32>
    %400 = arith.minimumf %394, %399 : vector<2x128xf32>
    %401 = arith.subf %400, %398 : vector<2x128xf32>
    %cst_90 = arith.constant 0.000000e+00 : f32
    %402 = vector.broadcast %cst_90 : f32 to vector<2x128xf32>
    %403 = arith.maximumf %401, %402 : vector<2x128xf32>
    %404 = vector.extract_strided_slice %403 {offsets = [0, 0], sizes = [1, 128], strides = [1, 1]} : vector<2x128xf32> to vector<1x128xf32>
    %405 = vector.extract_strided_slice %403 {offsets = [1, 0], sizes = [1, 128], strides = [1, 1]} : vector<2x128xf32> to vector<1x128xf32>
    %406 = arith.mulf %404, %405 : vector<1x128xf32>
    %407 = vector.broadcast %391 : vector<1x1xf32> to vector<1x128xf32>
    %408 = arith.addf %395, %407 : vector<1x128xf32>
    %409 = arith.subf %408, %406 : vector<1x128xf32>
    %cst_91 = arith.constant 9.99999997E-7 : f32
    %410 = vector.broadcast %cst_91 : f32 to vector<1x128xf32>
    %411 = arith.addf %409, %410 : vector<1x128xf32>
    %412 = vector.broadcast %392 : vector<1x1xf32> to vector<1x128xf32>
    %413 = arith.cmpf oeq, %396, %412 : vector<1x128xf32>
    %cst_92 = arith.constant 3.000000e-01 : f32
    %414 = vector.broadcast %cst_92 : f32 to vector<1x128xf32>
    %415 = arith.mulf %414, %411 : vector<1x128xf32>
    %416 = arith.cmpf ogt, %406, %415 : vector<1x128xf32>
    %417 = arith.andi %413, %416 : vector<1x128xi1>
    %418 = arith.ori %376, %417 : vector<1x128xi1>
    %cst_93 = arith.constant -1.000000e+30 : f32
    %419 = vector.broadcast %cst_93 : f32 to vector<1x128xf32>
    %420 = arith.select %418, %419, %354 : vector<1x128xi1>, vector<1x128xf32>
    %cst_94 = arith.constant 1.000000e-01 : f32
    %421 = vector.broadcast %cst_94 : f32 to vector<1x1xf32>
    %422 = arith.cmpf oge, %374, %421 : vector<1x1xf32>
    %c4_i32_95 = arith.constant 4 : i32
    %423 = vector.broadcast %c4_i32_95 : i32 to vector<8x1xi32>
    %424 = arith.cmpi eq, %107, %423 : vector<8x1xi32>
    %425 = vector.shape_cast %374 : vector<1x1xf32> to vector<1x1xf32>
    %426 = vector.broadcast %425 : vector<1x1xf32> to vector<8x1xf32>
    %427 = arith.select %424, %426, %388 : vector<8x1xi1>, vector<8x1xf32>
    %cst_96 = arith.constant -1.000000e+00 : f32
    %428 = vector.shape_cast %422 : vector<1x1xi1> to vector<1x1xi1>
    %429 = vector.broadcast %428 : vector<1x1xi1> to vector<8x1xi1>
    %430 = vector.broadcast %cst_96 : f32 to vector<8x1xf32>
    %431 = arith.select %429, %427, %430 : vector<8x1xi1>, vector<8x1xf32>
    %c4_i32_97 = arith.constant 4 : i32
    %432 = vector.broadcast %c4_i32_97 : i32 to vector<1x128xi32>
    %433 = arith.cmpi eq, %106, %432 : vector<1x128xi32>
    %434 = vector.shape_cast %433 : vector<1x128xi1> to vector<1x128xi1>
    %435 = vector.broadcast %434 : vector<1x128xi1> to vector<8x128xi1>
    %436 = vector.shape_cast %431 : vector<8x1xf32> to vector<8x1xf32>
    %437 = vector.broadcast %436 : vector<8x1xf32> to vector<8x128xf32>
    %438 = arith.select %435, %437, %372 : vector<8x128xi1>, vector<8x128xf32>
    %cst_98 = arith.constant dense<0xFF800000> : vector<1xf32>
    %439 = vector.multi_reduction <maximumf>, %420, %cst_98 [1] : vector<1x128xf32> to vector<1xf32>
    %440 = vector.shape_cast %439 : vector<1xf32> to vector<1x1xf32>
    %441 = vector.broadcast %440 : vector<1x1xf32> to vector<1x128xf32>
    %442 = arith.cmpf oeq, %420, %441 : vector<1x128xf32>
    %cst_99 = arith.constant 0.000000e+00 : f32
    %443 = vector.shape_cast %442 : vector<1x128xi1> to vector<1x128xi1>
    %444 = vector.broadcast %443 : vector<1x128xi1> to vector<8x128xi1>
    %445 = vector.broadcast %cst_99 : f32 to vector<8x128xf32>
    %446 = arith.select %444, %101, %445 : vector<8x128xi1>, vector<8x128xf32>
    %cst_100 = arith.constant dense<0.000000e+00> : vector<8xf32>
    %447 = vector.multi_reduction <add>, %446, %cst_100 [1] : vector<8x128xf32> to vector<8xf32>
    %448 = vector.shape_cast %447 : vector<8xf32> to vector<8x1xf32>
    %449 = arith.extui %442 : vector<1x128xi1> to vector<1x128xi32>
    %450 = arith.sitofp %449 : vector<1x128xi32> to vector<1x128xf32>
    %cst_101 = arith.constant dense<0.000000e+00> : vector<1xf32>
    %451 = vector.multi_reduction <add>, %450, %cst_101 [1] : vector<1x128xf32> to vector<1xf32>
    %452 = vector.shape_cast %451 : vector<1xf32> to vector<1x1xf32>
    %453 = vector.broadcast %452 : vector<1x1xf32> to vector<8x1xf32>
    %454 = arith.divf %448, %453 : vector<8x1xf32>
    %455 = vector.extract_strided_slice %454 {offsets = [0, 0], sizes = [2, 1], strides = [1, 1]} : vector<8x1xf32> to vector<2x1xf32>
    %456 = vector.extract_strided_slice %454 {offsets = [2, 0], sizes = [2, 1], strides = [1, 1]} : vector<8x1xf32> to vector<2x1xf32>
    %457 = vector.extract_strided_slice %454 {offsets = [4, 0], sizes = [1, 1], strides = [1, 1]} : vector<8x1xf32> to vector<1x1xf32>
    %458 = vector.extract_strided_slice %454 {offsets = [5, 0], sizes = [1, 1], strides = [1, 1]} : vector<8x1xf32> to vector<1x1xf32>
    %459 = vector.extract_strided_slice %101 {offsets = [0, 0], sizes = [2, 128], strides = [1, 1]} : vector<8x128xf32> to vector<2x128xf32>
    %460 = vector.extract_strided_slice %101 {offsets = [2, 0], sizes = [2, 128], strides = [1, 1]} : vector<8x128xf32> to vector<2x128xf32>
    %461 = vector.extract_strided_slice %101 {offsets = [4, 0], sizes = [1, 128], strides = [1, 1]} : vector<8x128xf32> to vector<1x128xf32>
    %462 = vector.extract_strided_slice %101 {offsets = [5, 0], sizes = [1, 128], strides = [1, 1]} : vector<8x128xf32> to vector<1x128xf32>
    %463 = vector.broadcast %455 : vector<2x1xf32> to vector<2x128xf32>
    %464 = arith.maximumf %459, %463 : vector<2x128xf32>
    %465 = vector.broadcast %456 : vector<2x1xf32> to vector<2x128xf32>
    %466 = arith.minimumf %460, %465 : vector<2x128xf32>
    %467 = arith.subf %466, %464 : vector<2x128xf32>
    %cst_102 = arith.constant 0.000000e+00 : f32
    %468 = vector.broadcast %cst_102 : f32 to vector<2x128xf32>
    %469 = arith.maximumf %467, %468 : vector<2x128xf32>
    %470 = vector.extract_strided_slice %469 {offsets = [0, 0], sizes = [1, 128], strides = [1, 1]} : vector<2x128xf32> to vector<1x128xf32>
    %471 = vector.extract_strided_slice %469 {offsets = [1, 0], sizes = [1, 128], strides = [1, 1]} : vector<2x128xf32> to vector<1x128xf32>
    %472 = arith.mulf %470, %471 : vector<1x128xf32>
    %473 = vector.broadcast %457 : vector<1x1xf32> to vector<1x128xf32>
    %474 = arith.addf %461, %473 : vector<1x128xf32>
    %475 = arith.subf %474, %472 : vector<1x128xf32>
    %cst_103 = arith.constant 9.99999997E-7 : f32
    %476 = vector.broadcast %cst_103 : f32 to vector<1x128xf32>
    %477 = arith.addf %475, %476 : vector<1x128xf32>
    %478 = vector.broadcast %458 : vector<1x1xf32> to vector<1x128xf32>
    %479 = arith.cmpf oeq, %462, %478 : vector<1x128xf32>
    %cst_104 = arith.constant 3.000000e-01 : f32
    %480 = vector.broadcast %cst_104 : f32 to vector<1x128xf32>
    %481 = arith.mulf %480, %477 : vector<1x128xf32>
    %482 = arith.cmpf ogt, %472, %481 : vector<1x128xf32>
    %483 = arith.andi %479, %482 : vector<1x128xi1>
    %484 = arith.ori %442, %483 : vector<1x128xi1>
    %cst_105 = arith.constant -1.000000e+30 : f32
    %485 = vector.broadcast %cst_105 : f32 to vector<1x128xf32>
    %486 = arith.select %484, %485, %420 : vector<1x128xi1>, vector<1x128xf32>
    %cst_106 = arith.constant 1.000000e-01 : f32
    %487 = vector.broadcast %cst_106 : f32 to vector<1x1xf32>
    %488 = arith.cmpf oge, %440, %487 : vector<1x1xf32>
    %c4_i32_107 = arith.constant 4 : i32
    %489 = vector.broadcast %c4_i32_107 : i32 to vector<8x1xi32>
    %490 = arith.cmpi eq, %107, %489 : vector<8x1xi32>
    %491 = vector.shape_cast %440 : vector<1x1xf32> to vector<1x1xf32>
    %492 = vector.broadcast %491 : vector<1x1xf32> to vector<8x1xf32>
    %493 = arith.select %490, %492, %454 : vector<8x1xi1>, vector<8x1xf32>
    %cst_108 = arith.constant -1.000000e+00 : f32
    %494 = vector.shape_cast %488 : vector<1x1xi1> to vector<1x1xi1>
    %495 = vector.broadcast %494 : vector<1x1xi1> to vector<8x1xi1>
    %496 = vector.broadcast %cst_108 : f32 to vector<8x1xf32>
    %497 = arith.select %495, %493, %496 : vector<8x1xi1>, vector<8x1xf32>
    %c5_i32 = arith.constant 5 : i32
    %498 = vector.broadcast %c5_i32 : i32 to vector<1x128xi32>
    %499 = arith.cmpi eq, %106, %498 : vector<1x128xi32>
    %500 = vector.shape_cast %499 : vector<1x128xi1> to vector<1x128xi1>
    %501 = vector.broadcast %500 : vector<1x128xi1> to vector<8x128xi1>
    %502 = vector.shape_cast %497 : vector<8x1xf32> to vector<8x1xf32>
    %503 = vector.broadcast %502 : vector<8x1xf32> to vector<8x128xf32>
    %504 = arith.select %501, %503, %438 : vector<8x128xi1>, vector<8x128xf32>
    %cst_109 = arith.constant dense<0xFF800000> : vector<1xf32>
    %505 = vector.multi_reduction <maximumf>, %486, %cst_109 [1] : vector<1x128xf32> to vector<1xf32>
    %506 = vector.shape_cast %505 : vector<1xf32> to vector<1x1xf32>
    %507 = vector.broadcast %506 : vector<1x1xf32> to vector<1x128xf32>
    %508 = arith.cmpf oeq, %486, %507 : vector<1x128xf32>
    %cst_110 = arith.constant 0.000000e+00 : f32
    %509 = vector.shape_cast %508 : vector<1x128xi1> to vector<1x128xi1>
    %510 = vector.broadcast %509 : vector<1x128xi1> to vector<8x128xi1>
    %511 = vector.broadcast %cst_110 : f32 to vector<8x128xf32>
    %512 = arith.select %510, %101, %511 : vector<8x128xi1>, vector<8x128xf32>
    %cst_111 = arith.constant dense<0.000000e+00> : vector<8xf32>
    %513 = vector.multi_reduction <add>, %512, %cst_111 [1] : vector<8x128xf32> to vector<8xf32>
    %514 = vector.shape_cast %513 : vector<8xf32> to vector<8x1xf32>
    %515 = arith.extui %508 : vector<1x128xi1> to vector<1x128xi32>
    %516 = arith.sitofp %515 : vector<1x128xi32> to vector<1x128xf32>
    %cst_112 = arith.constant dense<0.000000e+00> : vector<1xf32>
    %517 = vector.multi_reduction <add>, %516, %cst_112 [1] : vector<1x128xf32> to vector<1xf32>
    %518 = vector.shape_cast %517 : vector<1xf32> to vector<1x1xf32>
    %519 = vector.broadcast %518 : vector<1x1xf32> to vector<8x1xf32>
    %520 = arith.divf %514, %519 : vector<8x1xf32>
    %521 = vector.extract_strided_slice %520 {offsets = [0, 0], sizes = [2, 1], strides = [1, 1]} : vector<8x1xf32> to vector<2x1xf32>
    %522 = vector.extract_strided_slice %520 {offsets = [2, 0], sizes = [2, 1], strides = [1, 1]} : vector<8x1xf32> to vector<2x1xf32>
    %523 = vector.extract_strided_slice %520 {offsets = [4, 0], sizes = [1, 1], strides = [1, 1]} : vector<8x1xf32> to vector<1x1xf32>
    %524 = vector.extract_strided_slice %520 {offsets = [5, 0], sizes = [1, 1], strides = [1, 1]} : vector<8x1xf32> to vector<1x1xf32>
    %525 = vector.extract_strided_slice %101 {offsets = [0, 0], sizes = [2, 128], strides = [1, 1]} : vector<8x128xf32> to vector<2x128xf32>
    %526 = vector.extract_strided_slice %101 {offsets = [2, 0], sizes = [2, 128], strides = [1, 1]} : vector<8x128xf32> to vector<2x128xf32>
    %527 = vector.extract_strided_slice %101 {offsets = [4, 0], sizes = [1, 128], strides = [1, 1]} : vector<8x128xf32> to vector<1x128xf32>
    %528 = vector.extract_strided_slice %101 {offsets = [5, 0], sizes = [1, 128], strides = [1, 1]} : vector<8x128xf32> to vector<1x128xf32>
    %529 = vector.broadcast %521 : vector<2x1xf32> to vector<2x128xf32>
    %530 = arith.maximumf %525, %529 : vector<2x128xf32>
    %531 = vector.broadcast %522 : vector<2x1xf32> to vector<2x128xf32>
    %532 = arith.minimumf %526, %531 : vector<2x128xf32>
    %533 = arith.subf %532, %530 : vector<2x128xf32>
    %cst_113 = arith.constant 0.000000e+00 : f32
    %534 = vector.broadcast %cst_113 : f32 to vector<2x128xf32>
    %535 = arith.maximumf %533, %534 : vector<2x128xf32>
    %536 = vector.extract_strided_slice %535 {offsets = [0, 0], sizes = [1, 128], strides = [1, 1]} : vector<2x128xf32> to vector<1x128xf32>
    %537 = vector.extract_strided_slice %535 {offsets = [1, 0], sizes = [1, 128], strides = [1, 1]} : vector<2x128xf32> to vector<1x128xf32>
    %538 = arith.mulf %536, %537 : vector<1x128xf32>
    %539 = vector.broadcast %523 : vector<1x1xf32> to vector<1x128xf32>
    %540 = arith.addf %527, %539 : vector<1x128xf32>
    %541 = arith.subf %540, %538 : vector<1x128xf32>
    %cst_114 = arith.constant 9.99999997E-7 : f32
    %542 = vector.broadcast %cst_114 : f32 to vector<1x128xf32>
    %543 = arith.addf %541, %542 : vector<1x128xf32>
    %544 = vector.broadcast %524 : vector<1x1xf32> to vector<1x128xf32>
    %545 = arith.cmpf oeq, %528, %544 : vector<1x128xf32>
    %cst_115 = arith.constant 3.000000e-01 : f32
    %546 = vector.broadcast %cst_115 : f32 to vector<1x128xf32>
    %547 = arith.mulf %546, %543 : vector<1x128xf32>
    %548 = arith.cmpf ogt, %538, %547 : vector<1x128xf32>
    %549 = arith.andi %545, %548 : vector<1x128xi1>
    %550 = arith.ori %508, %549 : vector<1x128xi1>
    %cst_116 = arith.constant -1.000000e+30 : f32
    %551 = vector.broadcast %cst_116 : f32 to vector<1x128xf32>
    %552 = arith.select %550, %551, %486 : vector<1x128xi1>, vector<1x128xf32>
    %cst_117 = arith.constant 1.000000e-01 : f32
    %553 = vector.broadcast %cst_117 : f32 to vector<1x1xf32>
    %554 = arith.cmpf oge, %506, %553 : vector<1x1xf32>
    %c4_i32_118 = arith.constant 4 : i32
    %555 = vector.broadcast %c4_i32_118 : i32 to vector<8x1xi32>
    %556 = arith.cmpi eq, %107, %555 : vector<8x1xi32>
    %557 = vector.shape_cast %506 : vector<1x1xf32> to vector<1x1xf32>
    %558 = vector.broadcast %557 : vector<1x1xf32> to vector<8x1xf32>
    %559 = arith.select %556, %558, %520 : vector<8x1xi1>, vector<8x1xf32>
    %cst_119 = arith.constant -1.000000e+00 : f32
    %560 = vector.shape_cast %554 : vector<1x1xi1> to vector<1x1xi1>
    %561 = vector.broadcast %560 : vector<1x1xi1> to vector<8x1xi1>
    %562 = vector.broadcast %cst_119 : f32 to vector<8x1xf32>
    %563 = arith.select %561, %559, %562 : vector<8x1xi1>, vector<8x1xf32>
    %c6_i32 = arith.constant 6 : i32
    %564 = vector.broadcast %c6_i32 : i32 to vector<1x128xi32>
    %565 = arith.cmpi eq, %106, %564 : vector<1x128xi32>
    %566 = vector.shape_cast %565 : vector<1x128xi1> to vector<1x128xi1>
    %567 = vector.broadcast %566 : vector<1x128xi1> to vector<8x128xi1>
    %568 = vector.shape_cast %563 : vector<8x1xf32> to vector<8x1xf32>
    %569 = vector.broadcast %568 : vector<8x1xf32> to vector<8x128xf32>
    %570 = arith.select %567, %569, %504 : vector<8x128xi1>, vector<8x128xf32>
    %cst_120 = arith.constant dense<0xFF800000> : vector<1xf32>
    %571 = vector.multi_reduction <maximumf>, %552, %cst_120 [1] : vector<1x128xf32> to vector<1xf32>
    %572 = vector.shape_cast %571 : vector<1xf32> to vector<1x1xf32>
    %573 = vector.broadcast %572 : vector<1x1xf32> to vector<1x128xf32>
    %574 = arith.cmpf oeq, %552, %573 : vector<1x128xf32>
    %cst_121 = arith.constant 0.000000e+00 : f32
    %575 = vector.shape_cast %574 : vector<1x128xi1> to vector<1x128xi1>
    %576 = vector.broadcast %575 : vector<1x128xi1> to vector<8x128xi1>
    %577 = vector.broadcast %cst_121 : f32 to vector<8x128xf32>
    %578 = arith.select %576, %101, %577 : vector<8x128xi1>, vector<8x128xf32>
    %cst_122 = arith.constant dense<0.000000e+00> : vector<8xf32>
    %579 = vector.multi_reduction <add>, %578, %cst_122 [1] : vector<8x128xf32> to vector<8xf32>
    %580 = vector.shape_cast %579 : vector<8xf32> to vector<8x1xf32>
    %581 = arith.extui %574 : vector<1x128xi1> to vector<1x128xi32>
    %582 = arith.sitofp %581 : vector<1x128xi32> to vector<1x128xf32>
    %cst_123 = arith.constant dense<0.000000e+00> : vector<1xf32>
    %583 = vector.multi_reduction <add>, %582, %cst_123 [1] : vector<1x128xf32> to vector<1xf32>
    %584 = vector.shape_cast %583 : vector<1xf32> to vector<1x1xf32>
    %585 = vector.broadcast %584 : vector<1x1xf32> to vector<8x1xf32>
    %586 = arith.divf %580, %585 : vector<8x1xf32>
    %cst_124 = arith.constant 1.000000e-01 : f32
    %587 = vector.broadcast %cst_124 : f32 to vector<1x1xf32>
    %588 = arith.cmpf oge, %572, %587 : vector<1x1xf32>
    %c4_i32_125 = arith.constant 4 : i32
    %589 = vector.broadcast %c4_i32_125 : i32 to vector<8x1xi32>
    %590 = arith.cmpi eq, %107, %589 : vector<8x1xi32>
    %591 = vector.shape_cast %572 : vector<1x1xf32> to vector<1x1xf32>
    %592 = vector.broadcast %591 : vector<1x1xf32> to vector<8x1xf32>
    %593 = arith.select %590, %592, %586 : vector<8x1xi1>, vector<8x1xf32>
    %cst_126 = arith.constant -1.000000e+00 : f32
    %594 = vector.shape_cast %588 : vector<1x1xi1> to vector<1x1xi1>
    %595 = vector.broadcast %594 : vector<1x1xi1> to vector<8x1xi1>
    %596 = vector.broadcast %cst_126 : f32 to vector<8x1xf32>
    %597 = arith.select %595, %593, %596 : vector<8x1xi1>, vector<8x1xf32>
    %c7_i32 = arith.constant 7 : i32
    %598 = vector.broadcast %c7_i32 : i32 to vector<1x128xi32>
    %599 = arith.cmpi eq, %106, %598 : vector<1x128xi32>
    %600 = vector.shape_cast %599 : vector<1x128xi1> to vector<1x128xi1>
    %601 = vector.broadcast %600 : vector<1x128xi1> to vector<8x128xi1>
    %602 = vector.shape_cast %597 : vector<8x1xf32> to vector<8x1xf32>
    %603 = vector.broadcast %602 : vector<8x1xf32> to vector<8x128xf32>
    %604 = arith.select %601, %603, %570 : vector<8x128xi1>, vector<8x128xf32>
    %c0_127 = arith.constant 0 : index
    %c0_128 = arith.constant 0 : index
    %c0_129 = arith.constant 0 : index
    %605 = vector.load %arg5[%c0_127, %c0_128, %c0_129] : memref<1x8x128xf32, #tpu.memory_space<vmem>>, vector<1x8x128xf32>
    %606 = vector.shape_cast %605 : vector<1x8x128xf32> to vector<8x128xf32>
    %607 = vector.shape_cast %604 : vector<8x128xf32> to vector<1x8x128xf32>
    tpu.vector_store %arg5[%c0_127, %c0_128, %c0_129], %607 {strides = array<i32>} : memref<1x8x128xf32, #tpu.memory_space<vmem>>, vector<1x8x128xf32>,
    return
  }
  func.func @transform_0(%arg0: i32, %arg1: memref<2x2xi32, #tpu.memory_space<smem>>) -> (i32, i32, i32) {
    %c0_i32 = arith.constant 0 : i32
    %c0_i32_0 = arith.constant 0 : i32
    %c0_i32_1 = arith.constant 0 : i32
    return %arg0, %c0_i32, %c0_i32_0 : i32, i32, i32
  }
  func.func @transform_1(%arg0: i32, %arg1: memref<2x2xi32, #tpu.memory_space<smem>>) -> (i32, i32, i32) {
    %c0_i32 = arith.constant 0 : i32
    %c0_i32_0 = arith.constant 0 : i32
    %c0_i32_1 = arith.constant 0 : i32
    return %arg0, %c0_i32, %c0_i32_0 : i32, i32, i32
  }
  func.func @transform_2(%arg0: i32, %arg1: memref<2x2xi32, #tpu.memory_space<smem>>) -> (i32, i32, i32) {
    %c0_i32 = arith.constant 0 : i32
    %c0_i32_0 = arith.constant 0 : i32
    %c0_i32_1 = arith.constant 0 : i32
    return %arg0, %c0_i32, %c0_i32_0 : i32, i32, i32
  }
  func.func @transform_3(%arg0: i32, %arg1: memref<2x2xi32, #tpu.memory_space<smem>>) -> (i32, i32, i32) {
    %c0_i32 = arith.constant 0 : i32
    %c0_i32_0 = arith.constant 0 : i32
    %c0_i32_1 = arith.constant 0 : i32
    return %arg0, %c0_i32, %c0_i32_0 : i32, i32, i32
  }
}

</mosaic_0001>

<llo_original>
// kernel: tpu_custom_call.1
$region0: #{tpu_custom_call.1}
  #allocation0 [shape = 'u32[]', space=smem, size = 0x4, offset = 0x4, fixed_abs, tag = 'smem constant byte address 0x4 - core index']
  #allocation1 [shape = 'u32[72,128]{1,0:T(1,128)}', space=vmem, size = 0x9000, scoped, tag = 'internal scratch']
  #allocation2 [shape = 's32[1]{0}', space=sflag, size = 0x4, scoped, tag = 'scoped memory for tpu_custom_call.1']
  #allocation3 [shape = 'u8[1024]{0}', space=smem, size = 0x400, scoped, tag = 'prefetched SMEM operand 0']
  %s0 = inlined_call_operand.hbm [shape: s32[2,2], index: 0, kind: input, shape index: {}]
  %s1 = inlined_call_operand.hbm [shape: f32[2,4,128], index: 1, kind: input, shape index: {}]
  %s2 = inlined_call_operand.hbm [shape: f32[2,8,128], index: 2, kind: input, shape index: {}]
  %s3 = inlined_call_operand.hbm [shape: f32[2,32,128], index: 3, kind: input, shape index: {}]
  %s4 = inlined_call_operand.hbm [shape: f32[2,8,128], index: 4, kind: output, shape index: {}]
  %s5 = sld [smem:[#allocation0]]
  $region57: #{tpu_custom_call.1} parent=0
    _
  %s7 = ssub.s32 1, %s5
  %s8 = scalar_select 0, %s7, %s5
  %s10 = sshll.u32 %s0, 4
  %s11 = int_to_ptr.hbm [resolvable:$true] %s10
  %13 = dma.hbm_to_smem %s11, 32, [#allocation3], [#allocation2]
  %15 = dma.done [#allocation2], 32
  %16 = sfence
  $region1: #{tpu_custom_call.1} parent=0
    #allocation4 [shape = 'u8[4096]{0}', space=vmem, size = 0x1000, scoped, tag = 'input window, operand 1']
    #allocation5 [shape = 's32[2]{0}', space=sflag, size = 0x8, scoped, tag = 'scoped memory for tpu_custom_call.1']
    #allocation6 [shape = 's32[2]{0}', space=sflag, size = 0x8, scoped, tag = 'scoped memory for tpu_custom_call.1']
    #allocation7 [shape = 'u8[8192]{0}', space=vmem, size = 0x2000, scoped, tag = 'input window, operand 2']
    #allocation8 [shape = 's32[2]{0}', space=sflag, size = 0x8, scoped, tag = 'scoped memory for tpu_custom_call.1']
    #allocation9 [shape = 'u8[32768]{0}', space=vmem, size = 0x8000, scoped, tag = 'input window, operand 3']
    #allocation10 [shape = 'u8[8192]{0}', space=vmem, size = 0x2000, scoped, tag = 'output window, operand 0']
    %17 = vsyncpa [#allocation5], 0
    %s18 = scalar_lea.sflag [#allocation5], 1
    %19 = vsyncpa %s18, 0
    %20 = vsyncpa [#allocation8], 0
    %s21 = scalar_lea.sflag [#allocation8], 1
    %22 = vsyncpa %s21, 0
    %23 = vsyncpa [#allocation6], 0
    %s24 = scalar_lea.sflag [#allocation6], 1
    %25 = vsyncpa %s24, 0
    loop: start=0, step=1, limit=4
    $region2: #{tpu_custom_call.1} parent=1 // loop_pre_header
      _
    $region3: #{tpu_custom_call.1} parent=1 // loop_header
      %s27 = sphi 0, %s31
      %p28 = scmp.ge.s32.totalorder %s27, 4
      %s37 = sphi 0, %s39
      %s40 = sphi 0, %s37
      %s41 = sphi 0, %s40
      %s57 = sphi 0, %s41
      %s63 = sphi 0, %s65
      %s66 = sphi 0, %s63
      %s67 = sphi 0, %s66
      %s83 = sphi 0, %s67
      %s89 = sphi 0, %s91
      %s92 = sphi 0, %s89
      %s93 = sphi 0, %s92
      %s109 = sphi 0, %s93
      %s115 = sphi 0, %s117
      %s118 = sphi 0, %s115
      %s119 = sphi 0, %s118
      %s135 = sphi 0, %s119
    $region4: #{tpu_custom_call.1} parent=1 // loop_header_branch
      %30 = sbr.rel (%p28) target = $region8
    $region5: #{tpu_custom_call.1} parent=1 // loop_body
      %s32 = ssub.s32 %s27, 1
      %s33 = ssub.s32 %s27, 2
      %s34 = sadd.s32 %s27, 1
      %s35 = ssub.s32 %s27, %s34
      %p36 = scmp.eq.s32.totalorder %s35, 0
      %s38 = sadd.s32 %s37, 1
      %s39 = scalar_select %p36, %s37, %s38
      %p42 = pneg %p36
      %p43 = scmp.eq.s32.totalorder %s27, 1
      %p44 = por %p42, %p43
      %p45 = scmp.ne.s32.totalorder %s37, %s40
      %p46 = scmp.eq.s32.totalorder %s27, 0
      %p47 = por %p45, %p46
      %p48 = scmp.ne.s32.totalorder %s37, %s40
      %p49 = scmp.eq.s32.totalorder %s32, 1
      %p50 = por %p48, %p49
      %p51 = scmp.ne.s32.totalorder %s40, %s41
      %p52 = scmp.eq.s32.totalorder %s32, 0
      %p53 = por %p51, %p52
      %p54 = scmp.ne.s32.totalorder %s40, %s41
      %p55 = scmp.eq.s32.totalorder %s33, 1
      %p56 = por %p54, %p55
      %p58 = scmp.ne.s32.totalorder %s41, %s57
      %p59 = scmp.eq.s32.totalorder %s33, 0
      %p60 = por %p58, %p59
      %s61 = ssub.s32 %s27, %s34
      %p62 = scmp.eq.s32.totalorder %s61, 0
      %s64 = sadd.s32 %s63, 1
      %s65 = scalar_select %p62, %s63, %s64
      %p68 = pneg %p62
      %p69 = scmp.eq.s32.totalorder %s27, 1
      %p70 = por %p68, %p69
      %p71 = scmp.ne.s32.totalorder %s63, %s66
      %p72 = scmp.eq.s32.totalorder %s27, 0
      %p73 = por %p71, %p72
      %p74 = scmp.ne.s32.totalorder %s63, %s66
      %p75 = scmp.eq.s32.totalorder %s32, 1
      %p76 = por %p74, %p75
      %p77 = scmp.ne.s32.totalorder %s66, %s67
      %p78 = scmp.eq.s32.totalorder %s32, 0
      %p79 = por %p77, %p78
      %p80 = scmp.ne.s32.totalorder %s66, %s67
      %p81 = scmp.eq.s32.totalorder %s33, 1
      %p82 = por %p80, %p81
      %p84 = scmp.ne.s32.totalorder %s67, %s83
      %p85 = scmp.eq.s32.totalorder %s33, 0
      %p86 = por %p84, %p85
      %s87 = ssub.s32 %s27, %s34
      %p88 = scmp.eq.s32.totalorder %s87, 0
      %s90 = sadd.s32 %s89, 1
      %s91 = scalar_select %p88, %s89, %s90
      %p94 = pneg %p88
      %p95 = scmp.eq.s32.totalorder %s27, 1
      %p96 = por %p94, %p95
      %p97 = scmp.ne.s32.totalorder %s89, %s92
      %p98 = scmp.eq.s32.totalorder %s27, 0
      %p99 = por %p97, %p98
      %p100 = scmp.ne.s32.totalorder %s89, %s92
      %p101 = scmp.eq.s32.totalorder %s32, 1
      %p102 = por %p100, %p101
      %p103 = scmp.ne.s32.totalorder %s92, %s93
      %p104 = scmp.eq.s32.totalorder %s32, 0
      %p105 = por %p103, %p104
      %p106 = scmp.ne.s32.totalorder %s92, %s93
      %p107 = scmp.eq.s32.totalorder %s33, 1
      %p108 = por %p106, %p107
      %p110 = scmp.ne.s32.totalorder %s93, %s109
      %p111 = scmp.eq.s32.totalorder %s33, 0
      %p112 = por %p110, %p111
      %s113 = ssub.s32 %s27, %s34
      %p114 = scmp.eq.s32.totalorder %s113, 0
      %s116 = sadd.s32 %s115, 1
      %s117 = scalar_select %p114, %s115, %s116
      %p120 = pneg %p114
      %p121 = scmp.eq.s32.totalorder %s27, 1
      %p122 = por %p120, %p121
      %p123 = scmp.ne.s32.totalorder %s115, %s118
      %p124 = scmp.eq.s32.totalorder %s27, 0
      %p125 = por %p123, %p124
      %p126 = scmp.ne.s32.totalorder %s115, %s118
      %p127 = scmp.eq.s32.totalorder %s32, 1
      %p128 = por %p126, %p127
      %p129 = scmp.ne.s32.totalorder %s118, %s119
      %p130 = scmp.eq.s32.totalorder %s32, 0
      %p131 = por %p129, %p130
      %p132 = scmp.ne.s32.totalorder %s118, %s119
      %p133 = scmp.eq.s32.totalorder %s33, 1
      %p134 = por %p132, %p133
      %p136 = scmp.ne.s32.totalorder %s119, %s135
      %p137 = scmp.eq.s32.totalorder %s33, 0
      %p138 = por %p136, %p137
      %p139 = scmp.le.s32.totalorder 1, %s27
      %p140 = scmp.lt.s32.totalorder %s27, 3
      %p141 = pnand %p139, %p140
      %p142 = pneg %p141
      // Predicated region
      $region9: #{tpu_custom_call.1} parent=5 // pred_check
        _
      $region10: #{tpu_custom_call.1} parent=5 // pred_check_branch
        %144 = sbr.rel (%p141) target = $region12
      $region11: #{tpu_custom_call.1} parent=5 // pred_region
        %s145 = ssub.s32 %s27, 1
      $region12: #{tpu_custom_call.1} parent=5 // pred_fallthru
        _
      %p146 = scmp.lt.s32.totalorder %s27, 2
      // Predicated region
      $region13: #{tpu_custom_call.1} parent=5 // pred_check
        %p147 = pneg %p146
      $region14: #{tpu_custom_call.1} parent=5 // pred_check_branch
        %149 = sbr.rel (%p147) target = $region16
      $region15: #{tpu_custom_call.1} parent=5 // pred_region
        // Predicated region
        $region17: #{tpu_custom_call.1} parent=15 // pred_check
          %p150 = pneg %p47
        $region18: #{tpu_custom_call.1} parent=15 // pred_check_branch
          %152 = sbr.rel (%p150) target = $region20
        $region19: #{tpu_custom_call.1} parent=15 // pred_region
          %s153 = sand.u32 %s37, 1
          %s154 = scalar_lea.sflag [#allocation5], %s153
          %s155 = sand.u32 %s37, 1
          %s156 = smul.addr %s155, 4
          %s157 = scalar_lea.vmem [#allocation4], %s156
          %159 = vsyncadd %s154, 0
          %s160 = smul.addr %s27, 4
          %s161 = scalar_lea.hbm %s1, %s160
          %s163 = sshll.u32 %s161, 4
          %s164 = int_to_ptr.hbm [resolvable:$true] %s163
          %s165 = sshll.u32 %s157, 4
          %s166 = int_to_ptr.vmem [resolvable:$true] %s165
          %168 = dma.hbm_to_vmem [thread:$0]  %s164, 64, %s166, %s154
        $region20: #{tpu_custom_call.1} parent=15 // pred_fallthru
          _
        // Predicated region
        $region21: #{tpu_custom_call.1} parent=15 // pred_check
          %p169 = pneg %p73
        $region22: #{tpu_custom_call.1} parent=15 // pred_check_branch
          %171 = sbr.rel (%p169) target = $region24
        $region23: #{tpu_custom_call.1} parent=15 // pred_region
          %s172 = sand.u32 %s27, 1
          %s173 = scalar_lea.sflag [#allocation8], %s172
          %s174 = sand.u32 %s63, 1
          %s175 = smul.addr %s174, 8
          %s176 = scalar_lea.vmem [#allocation7], %s175
          %178 = vsyncadd %s173, 0
          %s179 = smul.addr %s27, 8
          %s180 = scalar_lea.hbm %s2, %s179
          %s182 = sshll.u32 %s180, 4
          %s183 = int_to_ptr.hbm [resolvable:$true] %s182
          %s184 = sshll.u32 %s176, 4
          %s185 = int_to_ptr.vmem [resolvable:$true] %s184
          %187 = dma.hbm_to_vmem [thread:$0]  %s183, 128, %s185, %s173
        $region24: #{tpu_custom_call.1} parent=15 // pred_fallthru
          _
        // Predicated region
        $region25: #{tpu_custom_call.1} parent=15 // pred_check
          %p188 = pneg %p99
        $region26: #{tpu_custom_call.1} parent=15 // pred_check_branch
          %190 = sbr.rel (%p188) target = $region28
        $region27: #{tpu_custom_call.1} parent=15 // pred_region
          %s191 = sand.u32 %s27, 1
          %s192 = scalar_lea.sflag [#allocation8], %s191
          %s193 = sand.u32 %s89, 1
          %s194 = smul.addr %s193, 32
          %s195 = scalar_lea.vmem [#allocation9], %s194
          %197 = vsyncadd %s192, 0
          %s198 = smul.addr %s27, 4
          %s199 = smul.addr %s198, 8
          %s200 = scalar_lea.hbm %s3, %s199
          %s201 = sshll.u32 %s200, 4
          %s202 = int_to_ptr.hbm [resolvable:$true] %s201
          %s203 = sshll.u32 %s195, 4
          %s204 = int_to_ptr.vmem [resolvable:$true] %s203
          %209 = dma.hbm_to_vmem [thread:$0]  %s202, 512, %s204, %s192, 128, 128, 8
        $region28: #{tpu_custom_call.1} parent=15 // pred_fallthru
          _
      $region16: #{tpu_custom_call.1} parent=5 // pred_fallthru
        _
      %p210 = scmp.le.s32.totalorder 1, %s27
      %p211 = scmp.lt.s32.totalorder %s27, 3
      %p212 = pnand %p210, %p211
      %p213 = pneg %p212
      // Predicated region
      $region29: #{tpu_custom_call.1} parent=5 // pred_check
        _
      $region30: #{tpu_custom_call.1} parent=5 // pred_check_branch
        %215 = sbr.rel (%p212) target = $region32
      $region31: #{tpu_custom_call.1} parent=5 // pred_region
        %s216 = ssub.s32 %s27, 1
        %s217 = sand.u32 %s40, 1
        %s218 = scalar_lea.sflag [#allocation5], %s217
        %s219 = sand.u32 %s40, 1
        %s220 = smul.addr %s219, 4
        %s221 = scalar_lea.vmem [#allocation4], %s220
        // Predicated region
        $region33: #{tpu_custom_call.1} parent=31 // pred_check
          %p222 = pneg %p53
        $region34: #{tpu_custom_call.1} parent=31 // pred_check_branch
          %224 = sbr.rel (%p222) target = $region36
        $region35: #{tpu_custom_call.1} parent=31 // pred_region
          %226 = dma.done %s218, 64
        $region36: #{tpu_custom_call.1} parent=31 // pred_fallthru
          _
        %s227 = sand.u32 %s32, 1
        %s228 = scalar_lea.sflag [#allocation8], %s227
        %s229 = sand.u32 %s66, 1
        %s230 = smul.addr %s229, 8
        %s231 = scalar_lea.vmem [#allocation7], %s230
        // Predicated region
        $region37: #{tpu_custom_call.1} parent=31 // pred_check
          %p232 = pneg %p79
        $region38: #{tpu_custom_call.1} parent=31 // pred_check_branch
          %234 = sbr.rel (%p232) target = $region40
        $region39: #{tpu_custom_call.1} parent=31 // pred_region
          %236 = dma.done %s228, 128
        $region40: #{tpu_custom_call.1} parent=31 // pred_fallthru
          _
        %s237 = sand.u32 %s32, 1
        %s238 = scalar_lea.sflag [#allocation8], %s237
        %s239 = sand.u32 %s92, 1
        %s240 = smul.addr %s239, 32
        %s241 = scalar_lea.vmem [#allocation9], %s240
        // Predicated region
        $region41: #{tpu_custom_call.1} parent=31 // pred_check
          %p242 = pneg %p105
        $region42: #{tpu_custom_call.1} parent=31 // pred_check_branch
          %244 = sbr.rel (%p242) target = $region44
        $region43: #{tpu_custom_call.1} parent=31 // pred_region
          %246 = dma.done %s238, 512
        $region44: #{tpu_custom_call.1} parent=31 // pred_fallthru
          _
        %s247 = sand.u32 %s40, 1
        %s248 = scalar_lea.sflag [#allocation5], %s247
        %s249 = sand.u32 %s40, 1
        %s250 = smul.addr %s249, 4
        %s251 = scalar_lea.vmem [#allocation4], %s250
        %p252 = pneg %p53
        %p253 = pneg %p50
        %s254 = sand.u32 %s32, 1
        %s255 = scalar_lea.sflag [#allocation8], %s254
        %s256 = sand.u32 %s66, 1
        %s257 = smul.addr %s256, 8
        %s258 = scalar_lea.vmem [#allocation7], %s257
        %p259 = pneg %p79
        %p260 = pneg %p76
        %s261 = sand.u32 %s32, 1
        %s262 = scalar_lea.sflag [#allocation8], %s261
        %s263 = sand.u32 %s92, 1
        %s264 = smul.addr %s263, 32
        %s265 = scalar_lea.vmem [#allocation9], %s264
        %p266 = pneg %p105
        %p267 = pneg %p102
        %p268 = pneg %p131
        %p269 = pneg %p128
        %s270 = sand.u32 %s118, 1
        %s271 = scalar_lea.sflag [#allocation6], %s270
        %s272 = sand.u32 %s118, 1
        %s273 = smul.addr %s272, 8
        %s274 = scalar_lea.vmem [#allocation10], %s273
        %s275 = smul.u32 %s32, 128
        %s276 = sld [smem:[#allocation3 + %s275]]
        %s277 = scvt.s32.f32 %s276
        %s278 = sadd.s32 %s275, 1
        %s279 = sld [smem:[#allocation3 + %s278]]
        %s280 = scvt.s32.f32 %s279
        %v281 = vld [vmem:[%s231] sm:$0xff]
        %v282 = vrot.slane %v281, 4
        %v283 = vmax.f32 %v281, %v282
        %v284 = vrot.slane %v283, 2
        %v285 = vmax.f32 %v283, %v284
        %v286 = vrot.slane %v285, 1
        %v287 = vmax.f32 %v285, %v286
        %v288 = vlaneseq
        %v289 = vshrl.u32 %v288, 7
        %vm290 = vcmp.eq.f32.partialorder %v281, %v287
        %v291 = vsel %vm290, %v289, 8
        %v292 = vrot.slane %v291, 4
        %vm293 = vcmp.lt.s32.totalorder %v291, %v292
        %v294 = vsel %vm293, %v291, %v292
        %v295 = vrot.slane %v294, 2
        %vm296 = vcmp.lt.s32.totalorder %v294, %v295
        %v297 = vsel %vm296, %v294, %v295
        %v298 = vrot.slane %v297, 1
        %vm299 = vcmp.lt.s32.totalorder %v297, %v298
        %v300 = vsel %vm299, %v297, %v298
        %vm301 = vcmp.eq.s32.totalorder %v289, %v300
        %v302 = vsel %vm301, 1, 0
        %v303 = vcvt.s32.f32 %v302
        %v304 = vld [vmem:[%s241] sm:$0xff]
        %v305 = vmul.f32 %v303, %v304
        %v306 = vrot.slane %v305, 4
        %v307 = vadd.f32 %v305, %v306
        %v308 = vrot.slane %v307, 2
        %v309 = vadd.f32 %v307, %v308
        %v310 = vrot.slane %v309, 1
        %v311 = vadd.f32 %v309, %v310
        %v312 = vmul.f32 %v311, 0.1
        %v313 = vadd.f32 %v312, 0.0
        %v314 = vld [vmem:[%s241 + $0x8] sm:$0xff]
        %v315 = vmul.f32 %v303, %v314
        %v316 = vrot.slane %v315, 4
        %v317 = vadd.f32 %v315, %v316
        %v318 = vrot.slane %v317, 2
        %v319 = vadd.f32 %v317, %v318
        %v320 = vrot.slane %v319, 1
        %v321 = vadd.f32 %v319, %v320
        %v322 = vmul.f32 %v321, 0.1
        %v323 = vadd.f32 %v322, 0.0
        %v324 = vld [vmem:[%s241 + $0x10] sm:$0xff]
        %v325 = vmul.f32 %v303, %v324
        %v326 = vrot.slane %v325, 4
        %v327 = vadd.f32 %v325, %v326
        %v328 = vrot.slane %v327, 2
        %v329 = vadd.f32 %v327, %v328
        %v330 = vrot.slane %v329, 1
        %v331 = vadd.f32 %v329, %v330
        %v332 = vmul.f32 %v331, 0.2
        %v333 = vadd.f32 %v332, 0.0
        %v334 = vld [vmem:[%s241 + $0x18] sm:$0xff]
        %v335 = vmul.f32 %v303, %v334
        %v336 = vrot.slane %v335, 4
        %v337 = vadd.f32 %v335, %v336
        %v338 = vrot.slane %v337, 2
        %v339 = vadd.f32 %v337, %v338
        %v340 = vrot.slane %v339, 1
        %v341 = vadd.f32 %v339, %v340
        %v342 = vmul.f32 %v341, 0.2
        %v343 = vadd.f32 %v342, 0.0
        %vm344 = vcmask 1040384
        %v345 = vsel %vm344, %v313, %v323
        %v346 = vsel %vm344, %v333, %v343
        %v347 = vld [vmem:[%s221] sm:$0x3]
        %v348 = vld [vmem:[%s221 + $0x2] sm:$0x3]
        %v349 = vsub.f32 %v348, %v347
        %v350 = vmul.f32 %v349, 0.5
        %v351 = vadd.f32 %v347, %v350
        %v352 = vmul.f32 %v345, %v349
        %v353 = vadd.f32 %v352, %v351
        %v354 = vmul.f32 %v346, 1.442695
        %v355 = vpow.pop %v354
        %v356 = vmul.f32 %v355, %v349
        %v357 = vmul.f32 %v356, 0.5
        %v358 = vsub.f32 %v353, %v357
        %v359 = vadd.f32 %v353, %v357
        %vm360 = vcmp.eq.s32.totalorder %v289, 0
        %s361 = ssub.f32 %s280, 1.0
        %s362 = ssub.f32 %s277, 1.0
        %v363 = vstv %s361
        %v364 = vstv %s362
        %v365 = vsel %vm360, %v363, %v364
        %v366 = vmax.f32 %v358, 0.0
        %v367 = vmin.f32 %v365, %v366
        %v368 = vmax.f32 %v359, 0.0
        %v369 = vmin.f32 %v365, %v368
        %v370 = vsub.f32 %v369, %v367
        %v371 = vmax.f32 %v370, 0.0
        %v373 = vrot.slane %v371, 1
        %v375 = vmul.f32 %v371, %v373
        %v376 = vcvt.s32.f32 %v300
        %v378 = vrot.slane %v369, 6
        %v381 = vrot.slane %v375, 4
        %vm383 = vcmask 1041408
        %v384 = vsel %vm383, %v367, %v378
        %vm385 = vcmask 1043456
        %v386 = vsel %vm385, %v384, %v381
        %vm387 = vcmask 1044480
        %v388 = vsel %vm387, %v386, %v376
        %vm389 = vcmask 1045504
        %v390 = vsel %vm389, %v388, 0.0
        %vm391 = vcmp.ge.f32.partialorder %v287, 0.1
        %v392 = vsel %vm391, %v287, -1e+30
        %v393 = vlaneseq
        %v394 = vand.u32 %v393, 127
        %395 = vmax.xlane.f32.xlu0 %v392
        %v396 = vpop.xlane.xlu0 %395
        %vm397 = vcmp.eq.f32.partialorder %v392, %v396
        %v398 = vsel %vm397, 1, 0
        %vm399 = vcmp.eq.s32.totalorder %v398, 1
        %v400 = vsel %vm399, %v390, 0.0
        %401 = vadd.xlane.f32.xlu0 %v400
        %v402 = vpop.xlane.xlu0 %401
        %v403 = vcvt.s32.f32 %v398
        %404 = vadd.xlane.f32.xlu0 %v403
        %v405 = vpop.xlane.xlu0 %404
        %v406 = vrcp.pop %v405
        %v407 = vmul.f32 %v405, %v406
        %v408 = vsub.f32 1.0, %v407
        %v409 = vmul.f32 %v406, %v408
        %v410 = vadd.f32 %v406, %v409
        %vm411 = vweird.f32 %v405
        %vm412 = vweird.f32 %v406
        %vm413 = vmor %vm411, %vm412
        %v414 = vsel %vm413, %v406, %v410
        %v415 = vand.u32 2147483647, %v405
        %vm416 = vcmp.eq.f32.partialorder %v415, 8.507059e+37
        %v417 = vand.u32 %v405, 2147483648
        %v418 = vor.u32 1.1754944e-38, %v417
        %v419 = vsel %vm416, %v418, %v414
        %v420 = vmul.f32 %v402, %v419
        %v421 = vmax.f32 %v390, %v420
        %v422 = vmin.f32 %v390, %v420
        %v424 = vrot.slane %v421, 6
        %v426 = vsub.f32 %v422, %v424
        %v427 = vmax.f32 %v426, 0.0
        %v429 = vrot.slane %v427, 1
        %v431 = vmul.f32 %v427, %v429
        %v432 = vadd.f32 %v390, %v420
        %v434 = vrot.slane %v431, 6
        %v436 = vsub.f32 %v432, %v434
        %v437 = vadd.f32 %v436, 1e-06
        %vm438 = vcmp.eq.f32.partialorder %v390, %v420
        %v439 = vmul.f32 %v437, 0.3
        %v441 = vrot.slane %v439, 2
        %vm443 = vcmp.gt.f32.partialorder %v431, %v441
        %v444 = vsel %vm443, 1, 0
        %v445 = vrot.slane %v444, 5
        %vm446 = vcmp.ne.s32.totalorder %v445, 0
        %vm447 = vmand %vm438, %vm446
        %vm448 = vmor %vm397, %vm447
        %v449 = vsel %vm448, -1e+30, %v392
        %vm450 = vcmp.ge.f32.partialorder %v396, 0.1
        %vm451 = vcmp.eq.s32.totalorder %v289, 4
        %v452 = vsel %vm451, %v396, %v420
        %v453 = vsel %vm450, 1, 0
        %vm454 = vcmp.eq.s32.totalorder %v453, 1
        %v455 = vsel %vm454, %v452, -1.0
        %vm456 = vcmp.eq.s32.totalorder %v394, 0
        %v457 = vsel %vm456, 1, 0
        %vm458 = vcmp.eq.s32.totalorder %v457, 1
        %v459 = vsel %vm458, %v455, -1.0
        %vm460 = vcmask 1045509
        %v461 = vsel %vm460, %v449, -inf
        %462 = vmax.xlane.f32.xlu0 %v461
        %v463 = vpop.xlane.xlu0 %462
        %vm464 = vcmp.eq.f32.partialorder %v449, %v463
        %v465 = vsel %vm464, 1, 0
        %v466 = vperm.slane %v465, 5
        %vm467 = vcmp.eq.s32.totalorder %v466, 1
        %v468 = vsel %vm467, %v390, 0.0
        %469 = vadd.xlane.f32.xlu0 %v468
        %v470 = vpop.xlane.xlu0 %469
        %v471 = vcvt.s32.f32 %v465
        %v472 = vsel %vm460, %v471, 0.0
        %473 = vadd.xlane.f32.xlu0 %v472
        %v474 = vpop.xlane.xlu0 %473
        %v475 = vperm.slane %v474, 5
        %v476 = vrcp.pop %v475
        %v477 = vmul.f32 %v475, %v476
        %v478 = vsub.f32 1.0, %v477
        %v479 = vmul.f32 %v476, %v478
        %v480 = vadd.f32 %v476, %v479
        %vm481 = vweird.f32 %v475
        %vm482 = vweird.f32 %v476
        %vm483 = vmor %vm481, %vm482
        %v484 = vsel %vm483, %v476, %v480
        %v485 = vand.u32 2147483647, %v475
        %vm486 = vcmp.eq.f32.partialorder %v485, 8.507059e+37
        %v487 = vand.u32 %v475, 2147483648
        %v488 = vor.u32 1.1754944e-38, %v487
        %v489 = vsel %vm486, %v488, %v484
        %v490 = vmul.f32 %v470, %v489
        %v491 = vmax.f32 %v390, %v490
        %v492 = vmin.f32 %v390, %v490
        %v494 = vrot.slane %v491, 6
        %v496 = vsub.f32 %v492, %v494
        %v497 = vmax.f32 %v496, 0.0
        %v499 = vrot.slane %v497, 1
        %v501 = vmul.f32 %v497, %v499
        %v502 = vadd.f32 %v390, %v490
        %v504 = vrot.slane %v501, 6
        %v506 = vsub.f32 %v502, %v504
        %v507 = vadd.f32 %v506, 1e-06
        %vm508 = vcmp.eq.f32.partialorder %v390, %v490
        %v509 = vmul.f32 %v507, 0.3
        %v511 = vrot.slane %v509, 2
        %vm513 = vcmp.gt.f32.partialorder %v501, %v511
        %v514 = vsel %vm513, 1, 0
        %v515 = vrot.slane %v514, 5
        %vm516 = vcmp.ne.s32.totalorder %v515, 0
        %vm517 = vmand %vm508, %vm516
        %vm518 = vmor %vm464, %vm517
        %v519 = vsel %vm518, -1e+30, %v449
        %vm520 = vcmp.ge.f32.partialorder %v463, 0.1
        %v521 = vperm.slane %v463, 5
        %v522 = vsel %vm451, %v521, %v490
        %v523 = vsel %vm520, 1, 0
        %v524 = vperm.slane %v523, 5
        %vm525 = vcmp.eq.s32.totalorder %v524, 1
        %v526 = vsel %vm525, %v522, -1.0
        %vm527 = vcmp.eq.s32.totalorder %v394, 1
        %v528 = vsel %vm527, 1, 0
        %vm529 = vcmp.eq.s32.totalorder %v528, 1
        %v530 = vsel %vm529, %v526, %v459
        %v531 = vsel %vm460, %v519, -inf
        %532 = vmax.xlane.f32.xlu0 %v531
        %v533 = vpop.xlane.xlu0 %532
        %vm534 = vcmp.eq.f32.partialorder %v519, %v533
        %v535 = vsel %vm534, 1, 0
        %v536 = vperm.slane %v535, 5
        %vm537 = vcmp.eq.s32.totalorder %v536, 1
        %v538 = vsel %vm537, %v390, 0.0
        %539 = vadd.xlane.f32.xlu0 %v538
        %v540 = vpop.xlane.xlu0 %539
        %v541 = vcvt.s32.f32 %v535
        %v542 = vsel %vm460, %v541, 0.0
        %543 = vadd.xlane.f32.xlu0 %v542
        %v544 = vpop.xlane.xlu0 %543
        %v545 = vperm.slane %v544, 5
        %v546 = vrcp.pop %v545
        %v547 = vmul.f32 %v545, %v546
        %v548 = vsub.f32 1.0, %v547
        %v549 = vmul.f32 %v546, %v548
        %v550 = vadd.f32 %v546, %v549
        %vm551 = vweird.f32 %v545
        %vm552 = vweird.f32 %v546
        %vm553 = vmor %vm551, %vm552
        %v554 = vsel %vm553, %v546, %v550
        %v555 = vand.u32 2147483647, %v545
        %vm556 = vcmp.eq.f32.partialorder %v555, 8.507059e+37
        %v557 = vand.u32 %v545, 2147483648
        %v558 = vor.u32 1.1754944e-38, %v557
        %v559 = vsel %vm556, %v558, %v554
        %v560 = vmul.f32 %v540, %v559
        %v561 = vmax.f32 %v390, %v560
        %v562 = vmin.f32 %v390, %v560
        %v564 = vrot.slane %v561, 6
        %v566 = vsub.f32 %v562, %v564
        %v567 = vmax.f32 %v566, 0.0
        %v569 = vrot.slane %v567, 1
        %v571 = vmul.f32 %v567, %v569
        %v572 = vadd.f32 %v390, %v560
        %v574 = vrot.slane %v571, 6
        %v576 = vsub.f32 %v572, %v574
        %v577 = vadd.f32 %v576, 1e-06
        %vm578 = vcmp.eq.f32.partialorder %v390, %v560
        %v579 = vmul.f32 %v577, 0.3
        %v581 = vrot.slane %v579, 2
        %vm583 = vcmp.gt.f32.partialorder %v571, %v581
        %v584 = vsel %vm583, 1, 0
        %v585 = vrot.slane %v584, 5
        %vm586 = vcmp.ne.s32.totalorder %v585, 0
        %vm587 = vmand %vm578, %vm586
        %vm588 = vmor %vm534, %vm587
        %v589 = vsel %vm588, -1e+30, %v519
        %vm590 = vcmp.ge.f32.partialorder %v533, 0.1
        %v591 = vperm.slane %v533, 5
        %v592 = vsel %vm451, %v591, %v560
        %v593 = vsel %vm590, 1, 0
        %v594 = vperm.slane %v593, 5
        %vm595 = vcmp.eq.s32.totalorder %v594, 1
        %v596 = vsel %vm595, %v592, -1.0
        %vm597 = vcmp.eq.s32.totalorder %v394, 2
        %v598 = vsel %vm597, 1, 0
        %vm599 = vcmp.eq.s32.totalorder %v598, 1
        %v600 = vsel %vm599, %v596, %v530
        %v601 = vsel %vm460, %v589, -inf
        %602 = vmax.xlane.f32.xlu0 %v601
        %v603 = vpop.xlane.xlu0 %602
        %vm604 = vcmp.eq.f32.partialorder %v589, %v603
        %v605 = vsel %vm604, 1, 0
        %v606 = vperm.slane %v605, 5
        %vm607 = vcmp.eq.s32.totalorder %v606, 1
        %v608 = vsel %vm607, %v390, 0.0
        %609 = vadd.xlane.f32.xlu0 %v608
        %v610 = vpop.xlane.xlu0 %609
        %v611 = vcvt.s32.f32 %v605
        %v612 = vsel %vm460, %v611, 0.0
        %613 = vadd.xlane.f32.xlu0 %v612
        %v614 = vpop.xlane.xlu0 %613
        %v615 = vperm.slane %v614, 5
        %v616 = vrcp.pop %v615
        %v617 = vmul.f32 %v615, %v616
        %v618 = vsub.f32 1.0, %v617
        %v619 = vmul.f32 %v616, %v618
        %v620 = vadd.f32 %v616, %v619
        %vm621 = vweird.f32 %v615
        %vm622 = vweird.f32 %v616
        %vm623 = vmor %vm621, %vm622
        %v624 = vsel %vm623, %v616, %v620
        %v625 = vand.u32 2147483647, %v615
        %vm626 = vcmp.eq.f32.partialorder %v625, 8.507059e+37
        %v627 = vand.u32 %v615, 2147483648
        %v628 = vor.u32 1.1754944e-38, %v627
        %v629 = vsel %vm626, %v628, %v624
        %v630 = vmul.f32 %v610, %v629
        %v631 = vmax.f32 %v390, %v630
        %v632 = vmin.f32 %v390, %v630
        %v634 = vrot.slane %v631, 6
        %v636 = vsub.f32 %v632, %v634
        %v637 = vmax.f32 %v636, 0.0
        %v639 = vrot.slane %v637, 1
        %v641 = vmul.f32 %v637, %v639
        %v642 = vadd.f32 %v390, %v630
        %v644 = vrot.slane %v641, 6
        %v646 = vsub.f32 %v642, %v644
        %v647 = vadd.f32 %v646, 1e-06
        %vm648 = vcmp.eq.f32.partialorder %v390, %v630
        %v649 = vmul.f32 %v647, 0.3
        %v651 = vrot.slane %v649, 2
        %vm653 = vcmp.gt.f32.partialorder %v641, %v651
        %v654 = vsel %vm653, 1, 0
        %v655 = vrot.slane %v654, 5
        %vm656 = vcmp.ne.s32.totalorder %v655, 0
        %vm657 = vmand %vm648, %vm656
        %vm658 = vmor %vm604, %vm657
        %v659 = vsel %vm658, -1e+30, %v589
        %vm660 = vcmp.ge.f32.partialorder %v603, 0.1
        %v661 = vperm.slane %v603, 5
        %v662 = vsel %vm451, %v661, %v630
        %v663 = vsel %vm660, 1, 0
        %v664 = vperm.slane %v663, 5
        %vm665 = vcmp.eq.s32.totalorder %v664, 1
        %v666 = vsel %vm665, %v662, -1.0
        %vm667 = vcmp.eq.s32.totalorder %v394, 3
        %v668 = vsel %vm667, 1, 0
        %vm669 = vcmp.eq.s32.totalorder %v668, 1
        %v670 = vsel %vm669, %v666, %v600
        %v671 = vsel %vm460, %v659, -inf
        %672 = vmax.xlane.f32.xlu0 %v671
        %v673 = vpop.xlane.xlu0 %672
        %vm674 = vcmp.eq.f32.partialorder %v659, %v673
        %v675 = vsel %vm674, 1, 0
        %v676 = vperm.slane %v675, 5
        %vm677 = vcmp.eq.s32.totalorder %v676, 1
        %v678 = vsel %vm677, %v390, 0.0
        %679 = vadd.xlane.f32.xlu0 %v678
        %v680 = vpop.xlane.xlu0 %679
        %v681 = vcvt.s32.f32 %v675
        %v682 = vsel %vm460, %v681, 0.0
        %683 = vadd.xlane.f32.xlu0 %v682
        %v684 = vpop.xlane.xlu0 %683
        %v685 = vperm.slane %v684, 5
        %v686 = vrcp.pop %v685
        %v687 = vmul.f32 %v685, %v686
        %v688 = vsub.f32 1.0, %v687
        %v689 = vmul.f32 %v686, %v688
        %v690 = vadd.f32 %v686, %v689
        %vm691 = vweird.f32 %v685
        %vm692 = vweird.f32 %v686
        %vm693 = vmor %vm691, %vm692
        %v694 = vsel %vm693, %v686, %v690
        %v695 = vand.u32 2147483647, %v685
        %vm696 = vcmp.eq.f32.partialorder %v695, 8.507059e+37
        %v697 = vand.u32 %v685, 2147483648
        %v698 = vor.u32 1.1754944e-38, %v697
        %v699 = vsel %vm696, %v698, %v694
        %v700 = vmul.f32 %v680, %v699
        %v701 = vmax.f32 %v390, %v700
        %v702 = vmin.f32 %v390, %v700
        %v704 = vrot.slane %v701, 6
        %v706 = vsub.f32 %v702, %v704
        %v707 = vmax.f32 %v706, 0.0
        %v709 = vrot.slane %v707, 1
        %v711 = vmul.f32 %v707, %v709
        %v712 = vadd.f32 %v390, %v700
        %v714 = vrot.slane %v711, 6
        %v716 = vsub.f32 %v712, %v714
        %v717 = vadd.f32 %v716, 1e-06
        %vm718 = vcmp.eq.f32.partialorder %v390, %v700
        %v719 = vmul.f32 %v717, 0.3
        %v721 = vrot.slane %v719, 2
        %vm723 = vcmp.gt.f32.partialorder %v711, %v721
        %v724 = vsel %vm723, 1, 0
        %v725 = vrot.slane %v724, 5
        %vm726 = vcmp.ne.s32.totalorder %v725, 0
        %vm727 = vmand %vm718, %vm726
        %vm728 = vmor %vm674, %vm727
        %v729 = vsel %vm728, -1e+30, %v659
        %vm730 = vcmp.ge.f32.partialorder %v673, 0.1
        %v731 = vperm.slane %v673, 5
        %v732 = vsel %vm451, %v731, %v700
        %v733 = vsel %vm730, 1, 0
        %v734 = vperm.slane %v733, 5
        %vm735 = vcmp.eq.s32.totalorder %v734, 1
        %v736 = vsel %vm735, %v732, -1.0
        %vm737 = vcmp.eq.s32.totalorder %v394, 4
        %v738 = vsel %vm737, 1, 0
        %vm739 = vcmp.eq.s32.totalorder %v738, 1
        %v740 = vsel %vm739, %v736, %v670
        %v741 = vsel %vm460, %v729, -inf
        %742 = vmax.xlane.f32.xlu0 %v741
        %v743 = vpop.xlane.xlu0 %742
        %vm744 = vcmp.eq.f32.partialorder %v729, %v743
        %v745 = vsel %vm744, 1, 0
        %v746 = vperm.slane %v745, 5
        %vm747 = vcmp.eq.s32.totalorder %v746, 1
        %v748 = vsel %vm747, %v390, 0.0
        %749 = vadd.xlane.f32.xlu0 %v748
        %v750 = vpop.xlane.xlu0 %749
        %v751 = vcvt.s32.f32 %v745
        %v752 = vsel %vm460, %v751, 0.0
        %753 = vadd.xlane.f32.xlu0 %v752
        %v754 = vpop.xlane.xlu0 %753
        %v755 = vperm.slane %v754, 5
        %v756 = vrcp.pop %v755
        %v757 = vmul.f32 %v755, %v756
        %v758 = vsub.f32 1.0, %v757
        %v759 = vmul.f32 %v756, %v758
        %v760 = vadd.f32 %v756, %v759
        %vm761 = vweird.f32 %v755
        %vm762 = vweird.f32 %v756
        %vm763 = vmor %vm761, %vm762
        %v764 = vsel %vm763, %v756, %v760
        %v765 = vand.u32 2147483647, %v755
        %vm766 = vcmp.eq.f32.partialorder %v765, 8.507059e+37
        %v767 = vand.u32 %v755, 2147483648
        %v768 = vor.u32 1.1754944e-38, %v767
        %v769 = vsel %vm766, %v768, %v764
        %v770 = vmul.f32 %v750, %v769
        %v771 = vmax.f32 %v390, %v770
        %v772 = vmin.f32 %v390, %v770
        %v774 = vrot.slane %v771, 6
        %v776 = vsub.f32 %v772, %v774
        %v777 = vmax.f32 %v776, 0.0
        %v779 = vrot.slane %v777, 1
        %v781 = vmul.f32 %v777, %v779
        %v782 = vadd.f32 %v390, %v770
        %v784 = vrot.slane %v781, 6
        %v786 = vsub.f32 %v782, %v784
        %v787 = vadd.f32 %v786, 1e-06
        %vm788 = vcmp.eq.f32.partialorder %v390, %v770
        %v789 = vmul.f32 %v787, 0.3
        %v791 = vrot.slane %v789, 2
        %vm793 = vcmp.gt.f32.partialorder %v781, %v791
        %v794 = vsel %vm793, 1, 0
        %v795 = vrot.slane %v794, 5
        %vm796 = vcmp.ne.s32.totalorder %v795, 0
        %vm797 = vmand %vm788, %vm796
        %vm798 = vmor %vm744, %vm797
        %v799 = vsel %vm798, -1e+30, %v729
        %vm800 = vcmp.ge.f32.partialorder %v743, 0.1
        %v801 = vperm.slane %v743, 5
        %v802 = vsel %vm451, %v801, %v770
        %v803 = vsel %vm800, 1, 0
        %v804 = vperm.slane %v803, 5
        %vm805 = vcmp.eq.s32.totalorder %v804, 1
        %v806 = vsel %vm805, %v802, -1.0
        %vm807 = vcmp.eq.s32.totalorder %v394, 5
        %v808 = vsel %vm807, 1, 0
        %vm809 = vcmp.eq.s32.totalorder %v808, 1
        %v810 = vsel %vm809, %v806, %v740
        %v811 = vsel %vm460, %v799, -inf
        %812 = vmax.xlane.f32.xlu0 %v811
        %v813 = vpop.xlane.xlu0 %812
        %vm814 = vcmp.eq.f32.partialorder %v799, %v813
        %v815 = vsel %vm814, 1, 0
        %v816 = vperm.slane %v815, 5
        %vm817 = vcmp.eq.s32.totalorder %v816, 1
        %v818 = vsel %vm817, %v390, 0.0
        %819 = vadd.xlane.f32.xlu0 %v818
        %v820 = vpop.xlane.xlu0 %819
        %v821 = vcvt.s32.f32 %v815
        %v822 = vsel %vm460, %v821, 0.0
        %823 = vadd.xlane.f32.xlu0 %v822
        %v824 = vpop.xlane.xlu0 %823
        %v825 = vperm.slane %v824, 5
        %v826 = vrcp.pop %v825
        %v827 = vmul.f32 %v825, %v826
        %v828 = vsub.f32 1.0, %v827
        %v829 = vmul.f32 %v826, %v828
        %v830 = vadd.f32 %v826, %v829
        %vm831 = vweird.f32 %v825
        %vm832 = vweird.f32 %v826
        %vm833 = vmor %vm831, %vm832
        %v834 = vsel %vm833, %v826, %v830
        %v835 = vand.u32 2147483647, %v825
        %vm836 = vcmp.eq.f32.partialorder %v835, 8.507059e+37
        %v837 = vand.u32 %v825, 2147483648
        %v838 = vor.u32 1.1754944e-38, %v837
        %v839 = vsel %vm836, %v838, %v834
        %v840 = vmul.f32 %v820, %v839
        %v841 = vmax.f32 %v390, %v840
        %v842 = vmin.f32 %v390, %v840
        %v844 = vrot.slane %v841, 6
        %v846 = vsub.f32 %v842, %v844
        %v847 = vmax.f32 %v846, 0.0
        %v849 = vrot.slane %v847, 1
        %v851 = vmul.f32 %v847, %v849
        %v852 = vadd.f32 %v390, %v840
        %v854 = vrot.slane %v851, 6
        %v856 = vsub.f32 %v852, %v854
        %v857 = vadd.f32 %v856, 1e-06
        %vm858 = vcmp.eq.f32.partialorder %v390, %v840
        %v859 = vmul.f32 %v857, 0.3
        %v861 = vrot.slane %v859, 2
        %vm863 = vcmp.gt.f32.partialorder %v851, %v861
        %v864 = vsel %vm863, 1, 0
        %v865 = vrot.slane %v864, 5
        %vm866 = vcmp.ne.s32.totalorder %v865, 0
        %vm867 = vmand %vm858, %vm866
        %vm868 = vmor %vm814, %vm867
        %v869 = vsel %vm868, -1e+30, %v799
        %vm870 = vcmp.ge.f32.partialorder %v813, 0.1
        %v871 = vperm.slane %v813, 5
        %v872 = vsel %vm451, %v871, %v840
        %v873 = vsel %vm870, 1, 0
        %v874 = vperm.slane %v873, 5
        %vm875 = vcmp.eq.s32.totalorder %v874, 1
        %v876 = vsel %vm875, %v872, -1.0
        %vm877 = vcmp.eq.s32.totalorder %v394, 6
        %v878 = vsel %vm877, 1, 0
        %vm879 = vcmp.eq.s32.totalorder %v878, 1
        %v880 = vsel %vm879, %v876, %v810
        %v881 = vsel %vm460, %v869, -inf
        %882 = vmax.xlane.f32.xlu0 %v881
        %v883 = vpop.xlane.xlu0 %882
        %vm884 = vcmp.eq.f32.partialorder %v869, %v883
        %v885 = vsel %vm884, 1, 0
        %v886 = vperm.slane %v885, 5
        %vm887 = vcmp.eq.s32.totalorder %v886, 1
        %v888 = vsel %vm887, %v390, 0.0
        %889 = vadd.xlane.f32.xlu0 %v888
        %v890 = vpop.xlane.xlu0 %889
        %v891 = vcvt.s32.f32 %v885
        %v892 = vsel %vm460, %v891, 0.0
        %893 = vadd.xlane.f32.xlu0 %v892
        %v894 = vpop.xlane.xlu0 %893
        %v895 = vperm.slane %v894, 5
        %v896 = vrcp.pop %v895
        %v897 = vmul.f32 %v895, %v896
        %v898 = vsub.f32 1.0, %v897
        %v899 = vmul.f32 %v896, %v898
        %v900 = vadd.f32 %v896, %v899
        %vm901 = vweird.f32 %v895
        %vm902 = vweird.f32 %v896
        %vm903 = vmor %vm901, %vm902
        %v904 = vsel %vm903, %v896, %v900
        %v905 = vand.u32 2147483647, %v895
        %vm906 = vcmp.eq.f32.partialorder %v905, 8.507059e+37
        %v907 = vand.u32 %v895, 2147483648
        %v908 = vor.u32 1.1754944e-38, %v907
        %v909 = vsel %vm906, %v908, %v904
        %v910 = vmul.f32 %v890, %v909
        %vm911 = vcmp.ge.f32.partialorder %v883, 0.1
        %v912 = vperm.slane %v883, 5
        %v913 = vsel %vm451, %v912, %v910
        %v914 = vsel %vm911, 1, 0
        %v915 = vperm.slane %v914, 5
        %vm916 = vcmp.eq.s32.totalorder %v915, 1
        %v917 = vsel %vm916, %v913, -1.0
        %vm918 = vcmp.eq.s32.totalorder %v394, 7
        %v919 = vsel %vm918, 1, 0
        %vm920 = vcmp.eq.s32.totalorder %v919, 1
        %v921 = vsel %vm920, %v917, %v880
        %922 = vst [vmem:[%s274] sm:$0xff] %v921
        %s923 = sand.u32 %s118, 1
        %s924 = scalar_lea.sflag [#allocation6], %s923
        %s925 = sand.u32 %s118, 1
        %s926 = smul.addr %s925, 8
        %s927 = scalar_lea.vmem [#allocation10], %s926
        // Predicated region
        $region45: #{tpu_custom_call.1} parent=31 // pred_check
          %p928 = pneg %p128
        $region46: #{tpu_custom_call.1} parent=31 // pred_check_branch
          %930 = sbr.rel (%p928) target = $region48
        $region47: #{tpu_custom_call.1} parent=31 // pred_region
          %932 = vsyncadd %s924, 0
          %s933 = smul.addr %s32, 8
          %s934 = scalar_lea.hbm %s4, %s933
          %s936 = sshll.u32 %s927, 4
          %s937 = int_to_ptr.vmem [resolvable:$true] %s936
          %s938 = sshll.u32 %s934, 4
          %s939 = int_to_ptr.hbm [resolvable:$true] %s938
          %941 = dma.vmem_to_hbm [thread:$0]  %s937, 128, %s939, %s924
        $region48: #{tpu_custom_call.1} parent=31 // pred_fallthru
          _
      $region32: #{tpu_custom_call.1} parent=5 // pred_fallthru
        _
      %p942 = scmp.le.s32.totalorder 2, %s27
      // Predicated region
      $region49: #{tpu_custom_call.1} parent=5 // pred_check
        %p943 = pneg %p942
      $region50: #{tpu_custom_call.1} parent=5 // pred_check_branch
        %945 = sbr.rel (%p943) target = $region52
      $region51: #{tpu_custom_call.1} parent=5 // pred_region
        %s946 = ssub.s32 %s27, 2
        // Predicated region
        $region53: #{tpu_custom_call.1} parent=51 // pred_check
          %p947 = pneg %p134
        $region54: #{tpu_custom_call.1} parent=51 // pred_check_branch
          %949 = sbr.rel (%p947) target = $region56
        $region55: #{tpu_custom_call.1} parent=51 // pred_region
          %s950 = sand.u32 %s119, 1
          %s951 = scalar_lea.sflag [#allocation6], %s950
          %s952 = sand.u32 %s119, 1
          %s953 = smul.addr %s952, 8
          %s954 = scalar_lea.vmem [#allocation10], %s953
          %956 = dma.done %s951, 128
        $region56: #{tpu_custom_call.1} parent=51 // pred_fallthru
          _
      $region52: #{tpu_custom_call.1} parent=5 // pred_fallthru
        _
    $region6: #{tpu_custom_call.1} parent=1 // loop_footer
      %s31 = sadd.s32 1, %s27
    $region7: #{tpu_custom_call.1} parent=1 // loop_footer_branch
      %26 = sbr.rel target = $region3
    $region8: #{tpu_custom_call.1} parent=1 // loop_exit
      _
    %957 = vsyncpa [#allocation5], 1
    %s958 = scalar_lea.sflag [#allocation5], 1
    %959 = vsyncpa %s958, 1
    %960 = vsyncpa [#allocation8], 1
    %s961 = scalar_lea.sflag [#allocation8], 1
    %962 = vsyncpa %s961, 1
    %963 = vsyncpa [#allocation6], 1
    %s964 = scalar_lea.sflag [#allocation6], 1
    %965 = vsyncpa %s964, 1

</llo_original>
